<compile_context>
chip_gen: v7x
topology: tpu7x:2x2x1
jax: 0.10.0
libtpu: 0.0.40
codegen_flags: <defaults>
</compile_context>

<pallas_src>
import jax
import jax.numpy as jnp
import numpy as np
from jax.experimental import pallas as pl
from jax.experimental.pallas import tpu as pltpu


def _svd_kernel(u_idx_ref, i_idx_ref,        # scalar prefetch: (B_pad,) int32 in SMEM
                uemb_hbm, iemb_hbm,          # embedding tables, left in HBM (pl.ANY)
                ubias_ref, ibias_ref,        # (1, TILE) gathered per-pair biases (VMEM)
                gbias_ref,                   # (1, 1) global bias (SMEM)
                out_ref,                     # (1, TILE) output block (VMEM)
                ubuf, ibuf, sems):           # scratch: (TILE, E) x2 VMEM + DMA sems (2,)
    tile = ubuf.shape[0]
    base = pl.program_id(0) * tile

    # Issue all 2*TILE row gathers before the first wait: random-access HBM reads
    # are latency bound, so effective gather bandwidth scales with DMAs in flight.
    @pl.loop(0, tile)
    def _issue(j):
        u = u_idx_ref[base + j]
        i = i_idx_ref[base + j]
        pltpu.make_async_copy(uemb_hbm.at[pl.ds(u, 1)], ubuf.at[pl.ds(j, 1)],
                              sems.at[0]).start()
        pltpu.make_async_copy(iemb_hbm.at[pl.ds(i, 1)], ibuf.at[pl.ds(j, 1)],
                              sems.at[1]).start()

    # Wait for every row copy (all descriptors transfer the same row size).
    @pl.loop(0, tile)
    def _wait(j):
        pltpu.make_async_copy(uemb_hbm.at[pl.ds(0, 1)], ubuf.at[pl.ds(j, 1)],
                              sems.at[0]).wait()
        pltpu.make_async_copy(iemb_hbm.at[pl.ds(0, 1)], ibuf.at[pl.ds(j, 1)],
                              sems.at[1]).wait()

    # VPU elementwise multiply + XLU row reduce (XLU slot is otherwise idle);
    # deliberately NOT an MXU matmul -- the kernel is gather-bound regardless.
    dot = jnp.sum(ubuf[...] * ibuf[...], axis=1).reshape(1, tile)
    out_ref[...] = gbias_ref[0, 0] + ubias_ref[...] + ibias_ref[...] + dot


def svd_forward(u_idx, i_idx, uemb, iemb, ubias, ibias, gbias, *, tile=256):
    """Predict ratings gbias + b_u + b_i + <uemb[u], iemb[i]> for each pair -> (B,)."""
    B = int(u_idx.shape[0])
    E = int(uemb.shape[1])
    num_tiles = pl.cdiv(B, tile)
    b_pad = num_tiles * tile

    # Pad indices to a whole number of tiles (row 0 is a valid dummy; padded
    # results are discarded).  NOTE: out-of-range indices are not hard errors
    # here (unlike PyTorch's nn.Embedding).
    u_pad = jnp.zeros((b_pad,), jnp.int32).at[:B].set(u_idx.astype(jnp.int32))
    i_pad = jnp.zeros((b_pad,), jnp.int32).at[:B].set(i_idx.astype(jnp.int32))

    # Per-pair biases (4 B/pair): gather wrapper-side into a lane-dense
    # (1, B_pad) layout instead of two masked (1,1) DMAs per pair in the kernel.
    ub = jnp.take(ubias[:, 0], u_pad, axis=0).reshape(1, b_pad)
    ib = jnp.take(ibias[:, 0], i_pad, axis=0).reshape(1, b_pad)
    gb = jnp.asarray(gbias, jnp.float32).reshape(1, 1)

    out = pl.pallas_call(
        _svd_kernel,
        out_shape=jax.ShapeDtypeStruct((1, b_pad), jnp.float32),
        grid_spec=pltpu.PrefetchScalarGridSpec(
            num_scalar_prefetch=2,                  # u_pad, i_pad -> SMEM
            grid=(num_tiles,),                      # one step per TILE-pair tile
            in_specs=[
                pl.BlockSpec(memory_space=pl.ANY),                   # uemb (HBM)
                pl.BlockSpec(memory_space=pl.ANY),                   # iemb (HBM)
                pl.BlockSpec((1, tile), lambda t, u, i: (0, t)),     # ubias tile
                pl.BlockSpec((1, tile), lambda t, u, i: (0, t)),     # ibias tile
                pl.BlockSpec(memory_space=pltpu.MemorySpace.SMEM),   # gbias
            ],
            out_specs=pl.BlockSpec((1, tile), lambda t, u, i: (0, t)),
            scratch_shapes=[
                pltpu.VMEM((tile, E), jnp.float32),   # gathered user rows
                pltpu.VMEM((tile, E), jnp.float32),   # gathered item rows
                pltpu.SemaphoreType.DMA((2,)),        # user / item gather sems
            ],
        ),
        compiler_params=pltpu.CompilerParams(
            dimension_semantics=("parallel",)),       # v7x: 2 TCs split the tiles
    )(u_pad, i_pad, uemb, iemb, ub, ib, gb)

    return out.reshape(b_pad)[:B]


if __name__ == "__main__":
    # Small, deterministic synthetic setup (mirrors SVDModel.__init__ shapes).
    n_users, n_items, emb_size = 64, 128, 32
    gm = 3.5            # global mean rating -> gbias parameter
    B = 600             # not a multiple of the tile -> exercises the padding path

    key = jax.random.PRNGKey(0)
    k1, k2, k3, k4, k5, k6 = jax.random.split(key, 6)

    # nn.Embedding default init is N(0, 1)
    uemb = jax.random.normal(k1, (n_users, emb_size), dtype=jnp.float32)
    iemb = jax.random.normal(k2, (n_items, emb_size), dtype=jnp.float32)
    ubias = jax.random.normal(k3, (n_users, 1), dtype=jnp.float32)
    ibias = jax.random.normal(k4, (n_items, 1), dtype=jnp.float32)
    gbias = jnp.array([gm], dtype=jnp.float32)   # nn.Parameter([gm])

    u_idx = jax.random.randint(k5, (B,), 0, n_users, dtype=jnp.int32)
    i_idx = jax.random.randint(k6, (B,), 0, n_items, dtype=jnp.int32)

    out = svd_forward(u_idx, i_idx, uemb, iemb, ubias, ibias, gbias, tile=256)
    out = jax.block_until_ready(out)

    # Pure-JAX reference (same semantics as the PyTorch forward).
    ref = (gm
           + ubias[u_idx, 0]
           + ibias[i_idx, 0]
           + jnp.sum(uemb[u_idx] * iemb[i_idx], axis=1))

    assert out.shape == (B,)
    assert np.allclose(np.asarray(out), np.asarray(ref), rtol=1e-5, atol=1e-4), (
        float(np.max(np.abs(np.asarray(out) - np.asarray(ref)))))

    print("KERNEL_OK")
</pallas_src>

<mosaic_0001>
module attributes {stable_mosaic.version = 11 : i64} {
  func.func @_svd_kernel(%arg0: i32, %arg1: memref<768xi32, #tpu.memory_space<smem>>, %arg2: memref<768xi32, #tpu.memory_space<smem>>, %arg3: memref<64x32xf32, #tpu.memory_space<any>>, %arg4: memref<128x32xf32, #tpu.memory_space<any>>, %arg5: memref<1x256xf32, #tpu.memory_space<vmem>>, %arg6: memref<1x256xf32, #tpu.memory_space<vmem>>, %arg7: memref<1x1xf32, #tpu.memory_space<smem>>, %arg8: memref<1x256xf32, #tpu.memory_space<vmem>>, %arg9: memref<256x32xf32, #tpu.memory_space<vmem>>, %arg10: memref<256x32xf32, #tpu.memory_space<vmem>>, %arg11: memref<2x!tpu.dma_semaphore, #tpu.memory_space<semaphore_mem>>) attributes {dimension_semantics = [#tpu.dimension_semantics<parallel>], iteration_bounds = array<i64: 3>, scalar_prefetch = 2 : i64, scratch_operands = 3 : i64, tpu.core_type = #tpu.core_type<tc>, window_params = [{}, {}, {transform_indices = @transform_2, window_bounds = array<i64: 1, 256>}, {transform_indices = @transform_3, window_bounds = array<i64: 1, 256>}, {transform_indices = @transform_4, window_bounds = array<i64: 1, 1>}, {transform_indices = @transform_5, window_bounds = array<i64: 1, 256>}]} {
    %c256_i32 = arith.constant 256 : i32
    %0 = arith.muli %arg0, %c256_i32 : i32
    %c0_i32 = arith.constant 0 : i32
    %c256_i32_0 = arith.constant 256 : i32
    %1 = arith.addi %c0_i32, %c256_i32_0 : i32
    %c1_i32 = arith.constant 1 : i32
    scf.for %arg12 = %c0_i32 to %1 step %c1_i32  : i32 {
      %c1_i32_17 = arith.constant 1 : i32
      %16 = arith.muli %arg12, %c1_i32_17 : i32
      %c0_i32_18 = arith.constant 0 : i32
      %17 = arith.addi %c0_i32_18, %16 : i32
      %18 = arith.addi %0, %17 : i32
      %19 = arith.index_cast %18 : i32 to index
      %20 = memref.load %arg1[%19] : memref<768xi32, #tpu.memory_space<smem>>
      %21 = arith.addi %0, %17 : i32
      %22 = arith.index_cast %21 : i32 to index
      %23 = memref.load %arg2[%22] : memref<768xi32, #tpu.memory_space<smem>>
      %c0_i32_19 = arith.constant 0 : i32
      %c0_i32_20 = arith.constant 0 : i32
      %24 = tpu.memref_slice %arg3[%20, %c0_i32_20] : memref<64x32xf32, #tpu.memory_space<any>> -> memref<1x32xf32, #tpu.memory_space<any>>
      %c0_i32_21 = arith.constant 0 : i32
      %25 = tpu.memref_slice %arg9[%17, %c0_i32_21] : memref<256x32xf32, #tpu.memory_space<vmem>> -> memref<1x32xf32, #tpu.memory_space<vmem>>
      %26 = tpu.memref_slice %arg11[%c0_i32_19] : memref<2x!tpu.dma_semaphore, #tpu.memory_space<semaphore_mem>> -> memref<1x!tpu.dma_semaphore, #tpu.memory_space<semaphore_mem>>
      %27 = tpu.memref_squeeze %26 : memref<1x!tpu.dma_semaphore, #tpu.memory_space<semaphore_mem>> -> memref<!tpu.dma_semaphore, #tpu.memory_space<semaphore_mem>>
      tpu.enqueue_dma source(%24 : memref<1x32xf32, #tpu.memory_space<any>>) target(%25 : memref<1x32xf32, #tpu.memory_space<vmem>>) target_semaphore(%27 : memref<!tpu.dma_semaphore, #tpu.memory_space<semaphore_mem>>)
      %c1_i32_22 = arith.constant 1 : i32
      %c0_i32_23 = arith.constant 0 : i32
      %28 = tpu.memref_slice %arg4[%23, %c0_i32_23] : memref<128x32xf32, #tpu.memory_space<any>> -> memref<1x32xf32, #tpu.memory_space<any>>
      %c0_i32_24 = arith.constant 0 : i32
      %29 = tpu.memref_slice %arg10[%17, %c0_i32_24] : memref<256x32xf32, #tpu.memory_space<vmem>> -> memref<1x32xf32, #tpu.memory_space<vmem>>
      %30 = tpu.memref_slice %arg11[%c1_i32_22] : memref<2x!tpu.dma_semaphore, #tpu.memory_space<semaphore_mem>> -> memref<1x!tpu.dma_semaphore, #tpu.memory_space<semaphore_mem>>
      %31 = tpu.memref_squeeze %30 : memref<1x!tpu.dma_semaphore, #tpu.memory_space<semaphore_mem>> -> memref<!tpu.dma_semaphore, #tpu.memory_space<semaphore_mem>>
      tpu.enqueue_dma source(%28 : memref<1x32xf32, #tpu.memory_space<any>>) target(%29 : memref<1x32xf32, #tpu.memory_space<vmem>>) target_semaphore(%31 : memref<!tpu.dma_semaphore, #tpu.memory_space<semaphore_mem>>)
    }
    %c256_i32_1 = arith.constant 256 : i32
    %c0_i32_2 = arith.constant 0 : i32
    %c256_i32_3 = arith.constant 256 : i32
    %2 = arith.addi %c0_i32_2, %c256_i32_3 : i32
    %c1_i32_4 = arith.constant 1 : i32
    scf.for %arg12 = %c0_i32_2 to %2 step %c1_i32_4  : i32 {
      %c1_i32_17 = arith.constant 1 : i32
      %16 = arith.muli %arg12, %c1_i32_17 : i32
      %c0_i32_18 = arith.constant 0 : i32
      %17 = arith.addi %c0_i32_18, %16 : i32
      %c0_i32_19 = arith.constant 0 : i32
      %c0_i32_20 = arith.constant 0 : i32
      %c0_i32_21 = arith.constant 0 : i32
      %18 = tpu.memref_slice %arg3[%c0_i32_20, %c0_i32_21] : memref<64x32xf32, #tpu.memory_space<any>> -> memref<1x32xf32, #tpu.memory_space<any>>
      %c0_i32_22 = arith.constant 0 : i32
      %19 = tpu.memref_slice %arg9[%17, %c0_i32_22] : memref<256x32xf32, #tpu.memory_space<vmem>> -> memref<1x32xf32, #tpu.memory_space<vmem>>
      %20 = tpu.memref_slice %arg11[%c0_i32_19] : memref<2x!tpu.dma_semaphore, #tpu.memory_space<semaphore_mem>> -> memref<1x!tpu.dma_semaphore, #tpu.memory_space<semaphore_mem>>
      %21 = tpu.memref_squeeze %20 : memref<1x!tpu.dma_semaphore, #tpu.memory_space<semaphore_mem>> -> memref<!tpu.dma_semaphore, #tpu.memory_space<semaphore_mem>>
      tpu.wait_dma2 semaphore(%21 : memref<!tpu.dma_semaphore, #tpu.memory_space<semaphore_mem>>) src(%18 : memref<1x32xf32, #tpu.memory_space<any>>) dst(%19 : memref<1x32xf32, #tpu.memory_space<vmem>>)
      %c1_i32_23 = arith.constant 1 : i32
      %c0_i32_24 = arith.constant 0 : i32
      %c0_i32_25 = arith.constant 0 : i32
      %22 = tpu.memref_slice %arg4[%c0_i32_24, %c0_i32_25] : memref<128x32xf32, #tpu.memory_space<any>> -> memref<1x32xf32, #tpu.memory_space<any>>
      %c0_i32_26 = arith.constant 0 : i32
      %23 = tpu.memref_slice %arg10[%17, %c0_i32_26] : memref<256x32xf32, #tpu.memory_space<vmem>> -> memref<1x32xf32, #tpu.memory_space<vmem>>
      %24 = tpu.memref_slice %arg11[%c1_i32_23] : memref<2x!tpu.dma_semaphore, #tpu.memory_space<semaphore_mem>> -> memref<1x!tpu.dma_semaphore, #tpu.memory_space<semaphore_mem>>
      %25 = tpu.memref_squeeze %24 : memref<1x!tpu.dma_semaphore, #tpu.memory_space<semaphore_mem>> -> memref<!tpu.dma_semaphore, #tpu.memory_space<semaphore_mem>>
      tpu.wait_dma2 semaphore(%25 : memref<!tpu.dma_semaphore, #tpu.memory_space<semaphore_mem>>) src(%22 : memref<1x32xf32, #tpu.memory_space<any>>) dst(%23 : memref<1x32xf32, #tpu.memory_space<vmem>>)
    }
    %c256_i32_5 = arith.constant 256 : i32
    %c0 = arith.constant 0 : index
    %c0_6 = arith.constant 0 : index
    %3 = vector.load %arg9[%c0, %c0_6] : memref<256x32xf32, #tpu.memory_space<vmem>>, vector<256x32xf32>
    %c0_7 = arith.constant 0 : index
    %c0_8 = arith.constant 0 : index
    %4 = vector.load %arg10[%c0_7, %c0_8] : memref<256x32xf32, #tpu.memory_space<vmem>>, vector<256x32xf32>
    %5 = arith.mulf %3, %4 : vector<256x32xf32>
    %cst = arith.constant dense<0.000000e+00> : vector<256xf32>
    %6 = vector.multi_reduction <add>, %5, %cst [1] : vector<256x32xf32> to vector<256xf32>
    %7 = vector.shape_cast %6 : vector<256xf32> to vector<1x256xf32>
    %c0_9 = arith.constant 0 : index
    %c0_10 = arith.constant 0 : index
    %8 = memref.load %arg7[%c0_9, %c0_10] : memref<1x1xf32, #tpu.memory_space<smem>>
    %c0_11 = arith.constant 0 : index
    %c0_12 = arith.constant 0 : index
    %9 = vector.load %arg5[%c0_11, %c0_12] : memref<1x256xf32, #tpu.memory_space<vmem>>, vector<1x256xf32>
    %10 = vector.broadcast %8 : f32 to vector<1x256xf32>
    %11 = arith.addf %10, %9 : vector<1x256xf32>
    %c0_13 = arith.constant 0 : index
    %c0_14 = arith.constant 0 : index
    %12 = vector.load %arg6[%c0_13, %c0_14] : memref<1x256xf32, #tpu.memory_space<vmem>>, vector<1x256xf32>
    %13 = arith.addf %11, %12 : vector<1x256xf32>
    %14 = arith.addf %13, %7 : vector<1x256xf32>
    %c0_15 = arith.constant 0 : index
    %c0_16 = arith.constant 0 : index
    %15 = vector.load %arg8[%c0_15, %c0_16] : memref<1x256xf32, #tpu.memory_space<vmem>>, vector<1x256xf32>
    tpu.vector_store %arg8[%c0_15, %c0_16], %14 {strides = array<i32>} : memref<1x256xf32, #tpu.memory_space<vmem>>, vector<1x256xf32>,
    return
  }
  func.func @transform_2(%arg0: i32, %arg1: memref<768xi32, #tpu.memory_space<smem>>, %arg2: memref<768xi32, #tpu.memory_space<smem>>) -> (i32, i32) {
    %c0_i32 = arith.constant 0 : i32
    %c0_i32_0 = arith.constant 0 : i32
    return %c0_i32, %arg0 : i32, i32
  }
  func.func @transform_3(%arg0: i32, %arg1: memref<768xi32, #tpu.memory_space<smem>>, %arg2: memref<768xi32, #tpu.memory_space<smem>>) -> (i32, i32) {
    %c0_i32 = arith.constant 0 : i32
    %c0_i32_0 = arith.constant 0 : i32
    return %c0_i32, %arg0 : i32, i32
  }
  func.func @transform_4(%arg0: i32, %arg1: memref<768xi32, #tpu.memory_space<smem>>, %arg2: memref<768xi32, #tpu.memory_space<smem>>) -> (i32, i32) {
    %c0_i32 = arith.constant 0 : i32
    %c0_i32_0 = arith.constant 0 : i32
    %c0_i32_1 = arith.constant 0 : i32
    return %c0_i32, %c0_i32_0 : i32, i32
  }
  func.func @transform_5(%arg0: i32, %arg1: memref<768xi32, #tpu.memory_space<smem>>, %arg2: memref<768xi32, #tpu.memory_space<smem>>) -> (i32, i32) {
    %c0_i32 = arith.constant 0 : i32
    %c0_i32_0 = arith.constant 0 : i32
    return %c0_i32, %arg0 : i32, i32
  }
}

</mosaic_0001>

<llo_original>
// kernel: tpu_custom_call.1
$region0: #{tpu_custom_call.1}
  #allocation0 [shape = 'u32[]', space=smem, size = 0x4, offset = 0x4, fixed_abs, tag = 'smem constant byte address 0x4 - core index']
  #allocation1 [shape = 'u32[144,128]{1,0:T(1,128)}', space=vmem, size = 0x12000, scoped, tag = 'internal scratch']
  #allocation2 [shape = 'f32[256,32]{1,0:T(8,128)}', space=vmem, size = 0x20000, scoped, tag = 'scratch operand']
  #allocation3 [shape = 'f32[256,32]{1,0:T(8,128)}', space=vmem, size = 0x20000, scoped, tag = 'scratch operand']
  #allocation4 [shape = 's32[2]{0}', space=sflag, size = 0x8, scoped, tag = 'scratch operand']
  #allocation5 [shape = 's32[1]{0}', space=sflag, size = 0x4, scoped, tag = 'scoped memory for tpu_custom_call.1']
  #allocation6 [shape = 'u8[3072]{0}', space=smem, size = 0xc00, scoped, tag = 'prefetched SMEM operand 0']
  #allocation7 [shape = 'u8[3072]{0}', space=smem, size = 0xc00, scoped, tag = 'prefetched SMEM operand 1']
  #allocation8 [shape = 'f32[1,1]{1,0:T(1,128)S(6)}', space=smem, size = 0x200, scoped, tag = 'scoped memory for tpu_custom_call.1']
  #allocation11 [shape = 's32[]', space=sflag, size = 0x4, offset = 0, fixed_abs, tag = 'sflag constant byte address 0x0 - dummy sync flag']
  #allocation12 [shape = 's32[]', space=sflag, size = 0x4, offset = 0, fixed_abs, tag = 'sflag constant byte address 0x0 - dummy sync flag']
  %s0 = inlined_call_operand.vmem [shape: s32[768], index: 0, kind: input, shape index: {}]
  %s1 = inlined_call_operand.vmem [shape: s32[768], index: 1, kind: input, shape index: {}]
  %s2 = inlined_call_operand.vmem [shape: f32[64,32], index: 2, kind: input, shape index: {}]
  %s3 = inlined_call_operand.vmem [shape: f32[128,32], index: 3, kind: input, shape index: {}]
  %s4 = inlined_call_operand.vmem [shape: f32[1,768], index: 4, kind: input, shape index: {}]
  %s5 = inlined_call_operand.vmem [shape: f32[1,768], index: 5, kind: input, shape index: {}]
  %s6 = inlined_call_operand.<no memory space> [shape: f32[1,1], index: 6, kind: input, shape index: {}]
  %s7 = inlined_call_operand.hbm [shape: f32[1,768], index: 7, kind: output, shape index: {}]
  %s8 = sld [smem:[#allocation0]]
  $region119: #{tpu_custom_call.1} parent=0
    _
  %s10 = ssub.s32 1, %s8
  %s11 = scalar_select 0, %s10, %s8
  %s12 = sshll.u32 %s0, 4
  %s13 = int_to_ptr.vmem [resolvable:$true] %s12
  %15 = dma.vmem_to_smem %s13, 96, [#allocation6], [#allocation5]
  %s16 = sshll.u32 %s1, 4
  %s17 = int_to_ptr.vmem [resolvable:$true] %s16
  %19 = dma.vmem_to_smem %s17, 96, [#allocation7], [#allocation5]
  %20 = sst [smem:[#allocation8]] %s6
  %21 = dma.done [#allocation5], 192
  %22 = sfence
  $region1: #{tpu_custom_call.1} parent=0
    #allocation9 [shape = 'u8[2048]{0}', space=vmem, size = 0x800, scoped, tag = 'output window, operand 0']
    #allocation10 [shape = 's32[2]{0}', space=sflag, size = 0x8, scoped, tag = 'scoped memory for tpu_custom_call.1']
    %23 = vsyncpa [#allocation10], 0
    %s24 = scalar_lea.sflag [#allocation10], 1
    %25 = vsyncpa %s24, 0
    loop: start=0, step=1, limit=5
    $region2: #{tpu_custom_call.1} parent=1 // loop_pre_header
      _
    $region3: #{tpu_custom_call.1} parent=1 // loop_header
      %s27 = sphi 0, %s31
      %p28 = scmp.ge.s32.totalorder %s27, 5
      %s37 = sphi 0, %s39
      %s40 = sphi 0, %s37
      %s41 = sphi 0, %s40
      %s57 = sphi 0, %s41
      %s63 = sphi 0, %s65
      %s66 = sphi 0, %s63
      %s67 = sphi 0, %s66
      %s83 = sphi 0, %s67
      %s87 = sphi 0, %s87
      %s89 = sphi 0, %s87
      %s90 = sphi 0, %s89
      %s104 = sphi 0, %s90
      %s110 = sphi 0, %s112
      %s113 = sphi 0, %s110
      %s114 = sphi 0, %s113
      %s130 = sphi 0, %s114
    $region4: #{tpu_custom_call.1} parent=1 // loop_header_branch
      %30 = sbr.rel (%p28) target = $region8
    $region5: #{tpu_custom_call.1} parent=1 // loop_body
      %s32 = ssub.s32 %s27, 1
      %s33 = ssub.s32 %s27, 2
      %s34 = sadd.s32 %s27, 1
      %s35 = ssub.s32 %s27, %s34
      %p36 = scmp.eq.s32.totalorder %s35, 0
      %s38 = sadd.s32 %s37, 1
      %s39 = scalar_select %p36, %s37, %s38
      %p42 = pneg %p36
      %p43 = scmp.eq.s32.totalorder %s27, 2
      %p44 = por %p42, %p43
      %p45 = scmp.ne.s32.totalorder %s37, %s40
      %p46 = scmp.eq.s32.totalorder %s27, 0
      %p47 = por %p45, %p46
      %p48 = scmp.ne.s32.totalorder %s37, %s40
      %p49 = scmp.eq.s32.totalorder %s32, 2
      %p50 = por %p48, %p49
      %p51 = scmp.ne.s32.totalorder %s40, %s41
      %p52 = scmp.eq.s32.totalorder %s32, 0
      %p53 = por %p51, %p52
      %p54 = scmp.ne.s32.totalorder %s40, %s41
      %p55 = scmp.eq.s32.totalorder %s33, 2
      %p56 = por %p54, %p55
      %p58 = scmp.ne.s32.totalorder %s41, %s57
      %p59 = scmp.eq.s32.totalorder %s33, 0
      %p60 = por %p58, %p59
      %s61 = ssub.s32 %s27, %s34
      %p62 = scmp.eq.s32.totalorder %s61, 0
      %s64 = sadd.s32 %s63, 1
      %s65 = scalar_select %p62, %s63, %s64
      %p68 = pneg %p62
      %p69 = scmp.eq.s32.totalorder %s27, 2
      %p70 = por %p68, %p69
      %p71 = scmp.ne.s32.totalorder %s63, %s66
      %p72 = scmp.eq.s32.totalorder %s27, 0
      %p73 = por %p71, %p72
      %p74 = scmp.ne.s32.totalorder %s63, %s66
      %p75 = scmp.eq.s32.totalorder %s32, 2
      %p76 = por %p74, %p75
      %p77 = scmp.ne.s32.totalorder %s66, %s67
      %p78 = scmp.eq.s32.totalorder %s32, 0
      %p79 = por %p77, %p78
      %p80 = scmp.ne.s32.totalorder %s66, %s67
      %p81 = scmp.eq.s32.totalorder %s33, 2
      %p82 = por %p80, %p81
      %p84 = scmp.ne.s32.totalorder %s67, %s83
      %p85 = scmp.eq.s32.totalorder %s33, 0
      %p86 = por %p84, %p85
      %s88 = sadd.s32 %s87, 1
      %p91 = scmp.eq.s32.totalorder %s27, 2
      %p92 = scmp.ne.s32.totalorder %s87, %s89
      %p93 = scmp.eq.s32.totalorder %s27, 0
      %p94 = por %p92, %p93
      %p95 = scmp.ne.s32.totalorder %s87, %s89
      %p96 = scmp.eq.s32.totalorder %s32, 2
      %p97 = por %p95, %p96
      %p98 = scmp.ne.s32.totalorder %s89, %s90
      %p99 = scmp.eq.s32.totalorder %s32, 0
      %p100 = por %p98, %p99
      %p101 = scmp.ne.s32.totalorder %s89, %s90
      %p102 = scmp.eq.s32.totalorder %s33, 2
      %p103 = por %p101, %p102
      %p105 = scmp.ne.s32.totalorder %s90, %s104
      %p106 = scmp.eq.s32.totalorder %s33, 0
      %p107 = por %p105, %p106
      %s108 = ssub.s32 %s27, %s34
      %p109 = scmp.eq.s32.totalorder %s108, 0
      %s111 = sadd.s32 %s110, 1
      %s112 = scalar_select %p109, %s110, %s111
      %p115 = pneg %p109
      %p116 = scmp.eq.s32.totalorder %s27, 2
      %p117 = por %p115, %p116
      %p118 = scmp.ne.s32.totalorder %s110, %s113
      %p119 = scmp.eq.s32.totalorder %s27, 0
      %p120 = por %p118, %p119
      %p121 = scmp.ne.s32.totalorder %s110, %s113
      %p122 = scmp.eq.s32.totalorder %s32, 2
      %p123 = por %p121, %p122
      %p124 = scmp.ne.s32.totalorder %s113, %s114
      %p125 = scmp.eq.s32.totalorder %s32, 0
      %p126 = por %p124, %p125
      %p127 = scmp.ne.s32.totalorder %s113, %s114
      %p128 = scmp.eq.s32.totalorder %s33, 2
      %p129 = por %p127, %p128
      %p131 = scmp.ne.s32.totalorder %s114, %s130
      %p132 = scmp.eq.s32.totalorder %s33, 0
      %p133 = por %p131, %p132
      %p134 = scmp.le.s32.totalorder 1, %s27
      %p135 = scmp.lt.s32.totalorder %s27, 4
      %p136 = pnand %p134, %p135
      %p137 = pneg %p136
      // Predicated region
      $region9: #{tpu_custom_call.1} parent=5 // pred_check
        _
      $region10: #{tpu_custom_call.1} parent=5 // pred_check_branch
        %139 = sbr.rel (%p136) target = $region12
      $region11: #{tpu_custom_call.1} parent=5 // pred_region
        %s140 = ssub.s32 %s27, 1
        // Predicated region
        $region13: #{tpu_custom_call.1} parent=11 // pred_check
          %p141 = pneg %p100
        $region14: #{tpu_custom_call.1} parent=11 // pred_check_branch
          %143 = sbr.rel (%p141) target = $region16
        $region15: #{tpu_custom_call.1} parent=11 // pred_region
          _
        $region16: #{tpu_custom_call.1} parent=11 // pred_fallthru
          _
      $region12: #{tpu_custom_call.1} parent=5 // pred_fallthru
        _
      %p144 = scmp.lt.s32.totalorder %s27, 3
      // Predicated region
      $region17: #{tpu_custom_call.1} parent=5 // pred_check
        %p145 = pneg %p144
      $region18: #{tpu_custom_call.1} parent=5 // pred_check_branch
        %147 = sbr.rel (%p145) target = $region20
      $region19: #{tpu_custom_call.1} parent=5 // pred_region
        // Predicated region
        $region21: #{tpu_custom_call.1} parent=19 // pred_check
          %p148 = pneg %p47
        $region22: #{tpu_custom_call.1} parent=19 // pred_check_branch
          %150 = sbr.rel (%p148) target = $region24
        $region23: #{tpu_custom_call.1} parent=19 // pred_region
          %s151 = smul.u32 2, %s27
          %p152 = scmp.lt.s32.totalorder %s151, 5
          %s153 = scalar_select %p152, %s151, 5
          %s154 = scalar_lea.vmem %s4, %s153
          %s155 = smul.u32 2, %s27
        $region24: #{tpu_custom_call.1} parent=19 // pred_fallthru
          _
        // Predicated region
        $region25: #{tpu_custom_call.1} parent=19 // pred_check
          %p156 = pneg %p73
        $region26: #{tpu_custom_call.1} parent=19 // pred_check_branch
          %158 = sbr.rel (%p156) target = $region28
        $region27: #{tpu_custom_call.1} parent=19 // pred_region
          %s159 = smul.u32 2, %s27
          %p160 = scmp.lt.s32.totalorder %s159, 5
          %s161 = scalar_select %p160, %s159, 5
          %s162 = scalar_lea.vmem %s5, %s161
          %s163 = smul.u32 2, %s27
        $region28: #{tpu_custom_call.1} parent=19 // pred_fallthru
          _
      $region20: #{tpu_custom_call.1} parent=5 // pred_fallthru
        _
      %p164 = scmp.le.s32.totalorder 1, %s27
      %p165 = scmp.lt.s32.totalorder %s27, 4
      %p166 = pnand %p164, %p165
      %p167 = pneg %p166
      // Predicated region
      $region29: #{tpu_custom_call.1} parent=5 // pred_check
        _
      $region30: #{tpu_custom_call.1} parent=5 // pred_check_branch
        %169 = sbr.rel (%p166) target = $region32
      $region31: #{tpu_custom_call.1} parent=5 // pred_region
        %s170 = ssub.s32 %s27, 1
        %s171 = smul.u32 2, %s32
        %p172 = scmp.lt.s32.totalorder %s171, 5
        %s173 = scalar_select %p172, %s171, 5
        %s174 = scalar_lea.vmem %s4, %s173
        %p175 = pneg %p53
        %p176 = pneg %p50
        %s177 = smul.u32 2, %s32
        %p178 = scmp.lt.s32.totalorder %s177, 5
        %s179 = scalar_select %p178, %s177, 5
        %s180 = scalar_lea.vmem %s5, %s179
        %p181 = pneg %p79
        %p182 = pneg %p76
        %p183 = pneg %p100
        %p184 = pneg %p97
        %p185 = pneg %p126
        %p186 = pneg %p123
        %s187 = sand.u32 %s113, 1
        %s188 = scalar_lea.sflag [#allocation10], %s187
        %s189 = sand.u32 %s113, 1
        %s190 = smul.addr %s189, 2
        %s191 = scalar_lea.vmem [#allocation9], %s190
        %s192 = smul.u32 2, %s32
        %p193 = scmp.lt.s32.totalorder %s192, 5
        %s194 = scalar_select %p193, %s192, 5
        %s195 = scalar_lea.vmem %s4, %s194
        %s196 = smul.u32 2, %s32
        %s197 = smul.u32 2, %s32
        %p198 = scmp.lt.s32.totalorder %s197, 5
        %s199 = scalar_select %p198, %s197, 5
        %s200 = scalar_lea.vmem %s5, %s199
        %s201 = smul.u32 2, %s32
        %s202 = smul.u32 2, %s32
        %s203 = smul.u32 %s32, 256
        loop: start=0, step=1, limit=256
        $region33: #{tpu_custom_call.1} parent=31 // loop_pre_header
          _
        $region34: #{tpu_custom_call.1} parent=31 // loop_header
          %s205 = sphi 0, %s209
          %p206 = scmp.ge.s32.totalorder %s205, 256
        $region35: #{tpu_custom_call.1} parent=31 // loop_header_branch
          %208 = sbr.rel (%p206) target = $region39
        $region36: #{tpu_custom_call.1} parent=31 // loop_body
          %s210 = sadd.s32 %s203, %s205
          %s211 = sld [smem:[#allocation6 + %s210]]
          %s212 = sld [smem:[#allocation7 + %s210]]
          %s213 = scalar_lea.vmem %s2, %s211
          %s214 = scalar_lea.vmem [#allocation2], %s205
          %p216 = scmp.lt.u32.totalorder 1, 8
          %p217 = pneg %p216
          // Predicated region
          $region40: #{tpu_custom_call.1} parent=36 // pred_check
            _
          $region41: #{tpu_custom_call.1} parent=36 // pred_check_branch
            %219 = sbr.rel (%p216) target = $region43
          $region42: #{tpu_custom_call.1} parent=36 // pred_region
            %s234 = sand.u32 1, 7
            %p235 = scmp.eq.s32.totalorder %s234, 0
            %p236 = pneg %p235
            // Predicated region
            $region55: #{tpu_custom_call.1} parent=42 // pred_check
              _
            $region56: #{tpu_custom_call.1} parent=42 // pred_check_branch
              %238 = sbr.rel (%p235) target = $region58
            $region57: #{tpu_custom_call.1} parent=42 // pred_region
              %s239 = sand.u32 1, 7
              %s240 = ssub.s32 1, %s239
              %s241 = scalar_lea.vmem %s213, %s240
              %s242 = ssub.s32 1, %s239
              %s243 = scalar_lea.vmem %s214, %s242 [#allocation2]
              %s244 = sshllo.u32 0, %s239
              loop: start=0, step=1, limit=1
              $region59: #{tpu_custom_call.1} parent=57 // loop_pre_header
                _
              $region60: #{tpu_custom_call.1} parent=57 // loop_header
                %s246 = sphi 0, %s250
                %p247 = scmp.ge.s32.totalorder %s246, 1
                %s251 = sphi %s241, %s241
                %s252 = sphi %s243, %s243
              $region61: #{tpu_custom_call.1} parent=57 // loop_header_branch
                %249 = sbr.rel (%p247) target = $region65
              $region62: #{tpu_custom_call.1} parent=57 // loop_body
                %v253 = vld [vmem:[%s251] sm:%s244]
                %254 = vst [vmem:[%s252] sm:%s244] %v253
              $region63: #{tpu_custom_call.1} parent=57 // loop_footer
                %s250 = sadd.s32 1, %s246
              $region64: #{tpu_custom_call.1} parent=57 // loop_footer_branch
                %245 = sbr.rel target = $region60
              $region65: #{tpu_custom_call.1} parent=57 // loop_exit
                _
            $region58: #{tpu_custom_call.1} parent=42 // pred_fallthru
              _
          $region43: #{tpu_custom_call.1} parent=36 // pred_fallthru
            _
          // Predicated region
          $region44: #{tpu_custom_call.1} parent=36 // pred_check
            %p220 = pneg %p216
          $region45: #{tpu_custom_call.1} parent=36 // pred_check_branch
            %222 = sbr.rel (%p220) target = $region47
          $region46: #{tpu_custom_call.1} parent=36 // pred_region
            %s223 = sshllo.u32 0, 1
            loop: start=0, step=1, limit=1
            $region48: #{tpu_custom_call.1} parent=46 // loop_pre_header
              _
            $region49: #{tpu_custom_call.1} parent=46 // loop_header
              %s225 = sphi 0, %s229
              %p226 = scmp.ge.s32.totalorder %s225, 1
              %s230 = sphi %s213, %s213
              %s231 = sphi %s214, %s214
            $region50: #{tpu_custom_call.1} parent=46 // loop_header_branch
              %228 = sbr.rel (%p226) target = $region54
            $region51: #{tpu_custom_call.1} parent=46 // loop_body
              %v232 = vld [vmem:[%s230] sm:%s223]
              %233 = vst [vmem:[%s231] sm:%s223] %v232
            $region52: #{tpu_custom_call.1} parent=46 // loop_footer
              %s229 = sadd.s32 1, %s225
            $region53: #{tpu_custom_call.1} parent=46 // loop_footer_branch
              %224 = sbr.rel target = $region49
            $region54: #{tpu_custom_call.1} parent=46 // loop_exit
              _
          $region47: #{tpu_custom_call.1} parent=36 // pred_fallthru
            _
          // Predicated region
          $region66: #{tpu_custom_call.1} parent=36 // pred_check
            _
          $region67: #{tpu_custom_call.1} parent=36 // pred_check_branch
            %257 = sbr.rel (0) target = $region69
          $region68: #{tpu_custom_call.1} parent=36 // pred_region
            %258 = vsyncadd [#allocation4], 16
          $region69: #{tpu_custom_call.1} parent=36 // pred_fallthru
            _
          %s259 = scalar_lea.vmem %s3, %s212
          %s260 = scalar_lea.vmem [#allocation3], %s205
          %s261 = scalar_lea.sflag [#allocation4], 1
          %p263 = scmp.lt.u32.totalorder 1, 8
          %p264 = pneg %p263
          // Predicated region
          $region70: #{tpu_custom_call.1} parent=36 // pred_check
            _
          $region71: #{tpu_custom_call.1} parent=36 // pred_check_branch
            %266 = sbr.rel (%p263) target = $region73
          $region72: #{tpu_custom_call.1} parent=36 // pred_region
            %s281 = sand.u32 1, 7
            %p282 = scmp.eq.s32.totalorder %s281, 0
            %p283 = pneg %p282
            // Predicated region
            $region85: #{tpu_custom_call.1} parent=72 // pred_check
              _
            $region86: #{tpu_custom_call.1} parent=72 // pred_check_branch
              %285 = sbr.rel (%p282) target = $region88
            $region87: #{tpu_custom_call.1} parent=72 // pred_region
              %s286 = sand.u32 1, 7
              %s287 = ssub.s32 1, %s286
              %s288 = scalar_lea.vmem %s259, %s287
              %s289 = ssub.s32 1, %s286
              %s290 = scalar_lea.vmem %s260, %s289 [#allocation3]
              %s291 = sshllo.u32 0, %s286
              loop: start=0, step=1, limit=1
              $region89: #{tpu_custom_call.1} parent=87 // loop_pre_header
                _
              $region90: #{tpu_custom_call.1} parent=87 // loop_header
                %s293 = sphi 0, %s297
                %p294 = scmp.ge.s32.totalorder %s293, 1
                %s298 = sphi %s288, %s288
                %s299 = sphi %s290, %s290
              $region91: #{tpu_custom_call.1} parent=87 // loop_header_branch
                %296 = sbr.rel (%p294) target = $region95
              $region92: #{tpu_custom_call.1} parent=87 // loop_body
                %v300 = vld [vmem:[%s298] sm:%s291]
                %301 = vst [vmem:[%s299] sm:%s291] %v300
              $region93: #{tpu_custom_call.1} parent=87 // loop_footer
                %s297 = sadd.s32 1, %s293
              $region94: #{tpu_custom_call.1} parent=87 // loop_footer_branch
                %292 = sbr.rel target = $region90
              $region95: #{tpu_custom_call.1} parent=87 // loop_exit
                _
            $region88: #{tpu_custom_call.1} parent=72 // pred_fallthru
              _
          $region73: #{tpu_custom_call.1} parent=36 // pred_fallthru
            _
          // Predicated region
          $region74: #{tpu_custom_call.1} parent=36 // pred_check
            %p267 = pneg %p263
          $region75: #{tpu_custom_call.1} parent=36 // pred_check_branch
            %269 = sbr.rel (%p267) target = $region77
          $region76: #{tpu_custom_call.1} parent=36 // pred_region
            %s270 = sshllo.u32 0, 1
            loop: start=0, step=1, limit=1
            $region78: #{tpu_custom_call.1} parent=76 // loop_pre_header
              _
            $region79: #{tpu_custom_call.1} parent=76 // loop_header
              %s272 = sphi 0, %s276
              %p273 = scmp.ge.s32.totalorder %s272, 1
              %s277 = sphi %s259, %s259
              %s278 = sphi %s260, %s260
            $region80: #{tpu_custom_call.1} parent=76 // loop_header_branch
              %275 = sbr.rel (%p273) target = $region84
            $region81: #{tpu_custom_call.1} parent=76 // loop_body
              %v279 = vld [vmem:[%s277] sm:%s270]
              %280 = vst [vmem:[%s278] sm:%s270] %v279
            $region82: #{tpu_custom_call.1} parent=76 // loop_footer
              %s276 = sadd.s32 1, %s272
            $region83: #{tpu_custom_call.1} parent=76 // loop_footer_branch
              %271 = sbr.rel target = $region79
            $region84: #{tpu_custom_call.1} parent=76 // loop_exit
              _
          $region77: #{tpu_custom_call.1} parent=36 // pred_fallthru
            _
          // Predicated region
          $region96: #{tpu_custom_call.1} parent=36 // pred_check
            _
          $region97: #{tpu_custom_call.1} parent=36 // pred_check_branch
            %304 = sbr.rel (0) target = $region99
          $region98: #{tpu_custom_call.1} parent=36 // pred_region
            %305 = vsyncadd %s261, 16
          $region99: #{tpu_custom_call.1} parent=36 // pred_fallthru
            _
        $region37: #{tpu_custom_call.1} parent=31 // loop_footer
          %s209 = sadd.s32 1, %s205
        $region38: #{tpu_custom_call.1} parent=31 // loop_footer_branch
          %204 = sbr.rel target = $region34
        $region39: #{tpu_custom_call.1} parent=31 // loop_exit
          _
        loop: start=0, step=1, limit=256
        $region100: #{tpu_custom_call.1} parent=31 // loop_pre_header
          _
        $region101: #{tpu_custom_call.1} parent=31 // loop_header
          %s307 = sphi 0, %s311
          %p308 = scmp.ge.s32.totalorder %s307, 256
        $region102: #{tpu_custom_call.1} parent=31 // loop_header_branch
          %310 = sbr.rel (%p308) target = $region106
        $region103: #{tpu_custom_call.1} parent=31 // loop_body
          %s312 = smul.u32 1, 1
          %s313 = sshll.u32 %s312, 4
          %314 = dma.done [#allocation4], %s313
          %s315 = scalar_lea.sflag [#allocation4], 1
          %s316 = sshll.u32 %s312, 4
          %317 = dma.done %s315, %s316
        $region104: #{tpu_custom_call.1} parent=31 // loop_footer
          %s311 = sadd.s32 1, %s307
        $region105: #{tpu_custom_call.1} parent=31 // loop_footer_branch
          %306 = sbr.rel target = $region101
        $region106: #{tpu_custom_call.1} parent=31 // loop_exit
          _
        %v318 = vld [vmem:[#allocation2] sm:$0xff]
        %v319 = vld [vmem:[#allocation2 + $0x8] sm:$0xff]
        %v320 = vld [vmem:[#allocation2 + $0x10] sm:$0xff]
        %v321 = vld [vmem:[#allocation2 + $0x18] sm:$0xff]
        %v322 = vld [vmem:[#allocation2 + $0x20] sm:$0xff]
        %v323 = vld [vmem:[#allocation2 + $0x28] sm:$0xff]
        %v324 = vld [vmem:[#allocation2 + $0x30] sm:$0xff]
        %v325 = vld [vmem:[#allocation2 + $0x38] sm:$0xff]
        %v326 = vld [vmem:[#allocation2 + $0x40] sm:$0xff]
        %v327 = vld [vmem:[#allocation2 + $0x48] sm:$0xff]
        %v328 = vld [vmem:[#allocation2 + $0x50] sm:$0xff]
        %v329 = vld [vmem:[#allocation2 + $0x58] sm:$0xff]
        %v330 = vld [vmem:[#allocation2 + $0x60] sm:$0xff]
        %v331 = vld [vmem:[#allocation2 + $0x68] sm:$0xff]
        %v332 = vld [vmem:[#allocation2 + $0x70] sm:$0xff]
        %v333 = vld [vmem:[#allocation2 + $0x78] sm:$0xff]
        %v334 = vld [vmem:[#allocation2 + $0x80] sm:$0xff]
        %v335 = vld [vmem:[#allocation2 + $0x88] sm:$0xff]
        %v336 = vld [vmem:[#allocation2 + $0x90] sm:$0xff]
        %v337 = vld [vmem:[#allocation2 + $0x98] sm:$0xff]
        %v338 = vld [vmem:[#allocation2 + $0xa0] sm:$0xff]
        %v339 = vld [vmem:[#allocation2 + $0xa8] sm:$0xff]
        %v340 = vld [vmem:[#allocation2 + $0xb0] sm:$0xff]
        %v341 = vld [vmem:[#allocation2 + $0xb8] sm:$0xff]
        %v342 = vld [vmem:[#allocation2 + $0xc0] sm:$0xff]
        %v343 = vld [vmem:[#allocation2 + $0xc8] sm:$0xff]
        %v344 = vld [vmem:[#allocation2 + $0xd0] sm:$0xff]
        %v345 = vld [vmem:[#allocation2 + $0xd8] sm:$0xff]
        %v346 = vld [vmem:[#allocation2 + $0xe0] sm:$0xff]
        %v347 = vld [vmem:[#allocation2 + $0xe8] sm:$0xff]
        %v348 = vld [vmem:[#allocation2 + $0xf0] sm:$0xff]
        %v349 = vld [vmem:[#allocation2 + $0xf8] sm:$0xff]
        %v350 = vld [vmem:[#allocation3] sm:$0xff]
        %v351 = vld [vmem:[#allocation3 + $0x8] sm:$0xff]
        %v352 = vld [vmem:[#allocation3 + $0x10] sm:$0xff]
        %v353 = vld [vmem:[#allocation3 + $0x18] sm:$0xff]
        %v354 = vld [vmem:[#allocation3 + $0x20] sm:$0xff]
        %v355 = vld [vmem:[#allocation3 + $0x28] sm:$0xff]
        %v356 = vld [vmem:[#allocation3 + $0x30] sm:$0xff]
        %v357 = vld [vmem:[#allocation3 + $0x38] sm:$0xff]
        %v358 = vld [vmem:[#allocation3 + $0x40] sm:$0xff]
        %v359 = vld [vmem:[#allocation3 + $0x48] sm:$0xff]
        %v360 = vld [vmem:[#allocation3 + $0x50] sm:$0xff]
        %v361 = vld [vmem:[#allocation3 + $0x58] sm:$0xff]
        %v362 = vld [vmem:[#allocation3 + $0x60] sm:$0xff]
        %v363 = vld [vmem:[#allocation3 + $0x68] sm:$0xff]
        %v364 = vld [vmem:[#allocation3 + $0x70] sm:$0xff]
        %v365 = vld [vmem:[#allocation3 + $0x78] sm:$0xff]
        %v366 = vld [vmem:[#allocation3 + $0x80] sm:$0xff]
        %v367 = vld [vmem:[#allocation3 + $0x88] sm:$0xff]
        %v368 = vld [vmem:[#allocation3 + $0x90] sm:$0xff]
        %v369 = vld [vmem:[#allocation3 + $0x98] sm:$0xff]
        %v370 = vld [vmem:[#allocation3 + $0xa0] sm:$0xff]
        %v371 = vld [vmem:[#allocation3 + $0xa8] sm:$0xff]
        %v372 = vld [vmem:[#allocation3 + $0xb0] sm:$0xff]
        %v373 = vld [vmem:[#allocation3 + $0xb8] sm:$0xff]
        %v374 = vld [vmem:[#allocation3 + $0xc0] sm:$0xff]
        %v375 = vld [vmem:[#allocation3 + $0xc8] sm:$0xff]
        %v376 = vld [vmem:[#allocation3 + $0xd0] sm:$0xff]
        %v377 = vld [vmem:[#allocation3 + $0xd8] sm:$0xff]
        %v378 = vld [vmem:[#allocation3 + $0xe0] sm:$0xff]
        %v379 = vld [vmem:[#allocation3 + $0xe8] sm:$0xff]
        %v380 = vld [vmem:[#allocation3 + $0xf0] sm:$0xff]
        %v381 = vld [vmem:[#allocation3 + $0xf8] sm:$0xff]
        %v382 = vmul.f32 %v318, %v350
        %v383 = vmul.f32 %v319, %v351
        %v384 = vmul.f32 %v320, %v352
        %v385 = vmul.f32 %v321, %v353
        %v386 = vmul.f32 %v322, %v354
        %v387 = vmul.f32 %v323, %v355
        %v388 = vmul.f32 %v324, %v356
        %v389 = vmul.f32 %v325, %v357
        %v390 = vmul.f32 %v326, %v358
        %v391 = vmul.f32 %v327, %v359
        %v392 = vmul.f32 %v328, %v360
        %v393 = vmul.f32 %v329, %v361
        %v394 = vmul.f32 %v330, %v362
        %v395 = vmul.f32 %v331, %v363
        %v396 = vmul.f32 %v332, %v364
        %v397 = vmul.f32 %v333, %v365
        %v398 = vmul.f32 %v334, %v366
        %v399 = vmul.f32 %v335, %v367
        %v400 = vmul.f32 %v336, %v368
        %v401 = vmul.f32 %v337, %v369
        %v402 = vmul.f32 %v338, %v370
        %v403 = vmul.f32 %v339, %v371
        %v404 = vmul.f32 %v340, %v372
        %v405 = vmul.f32 %v341, %v373
        %v406 = vmul.f32 %v342, %v374
        %v407 = vmul.f32 %v343, %v375
        %v408 = vmul.f32 %v344, %v376
        %v409 = vmul.f32 %v345, %v377
        %v410 = vmul.f32 %v346, %v378
        %v411 = vmul.f32 %v347, %v379
        %v412 = vmul.f32 %v348, %v380
        %v413 = vmul.f32 %v349, %v381
        %vm414 = vcmask 261120
        %v415 = vsel %vm414, %v382, 0.0
        %416 = vadd.xlane.f32.xlu0 %v415
        %v417 = vpop.xlane.xlu0 %416
        %v418 = vsel %vm414, %v383, 0.0
        %419 = vadd.xlane.f32.xlu0 %v418
        %v420 = vpop.xlane.xlu0 %419
        %v421 = vsel %vm414, %v384, 0.0
        %422 = vadd.xlane.f32.xlu0 %v421
        %v423 = vpop.xlane.xlu0 %422
        %v424 = vsel %vm414, %v385, 0.0
        %425 = vadd.xlane.f32.xlu0 %v424
        %v426 = vpop.xlane.xlu0 %425
        %v427 = vsel %vm414, %v386, 0.0
        %428 = vadd.xlane.f32.xlu0 %v427
        %v429 = vpop.xlane.xlu0 %428
        %v430 = vsel %vm414, %v387, 0.0
        %431 = vadd.xlane.f32.xlu0 %v430
        %v432 = vpop.xlane.xlu0 %431
        %v433 = vsel %vm414, %v388, 0.0
        %434 = vadd.xlane.f32.xlu0 %v433
        %v435 = vpop.xlane.xlu0 %434
        %v436 = vsel %vm414, %v389, 0.0
        %437 = vadd.xlane.f32.xlu0 %v436
        %v438 = vpop.xlane.xlu0 %437
        %v439 = vsel %vm414, %v390, 0.0
        %440 = vadd.xlane.f32.xlu0 %v439
        %v441 = vpop.xlane.xlu0 %440
        %v442 = vsel %vm414, %v391, 0.0
        %443 = vadd.xlane.f32.xlu0 %v442
        %v444 = vpop.xlane.xlu0 %443
        %v445 = vsel %vm414, %v392, 0.0
        %446 = vadd.xlane.f32.xlu0 %v445
        %v447 = vpop.xlane.xlu0 %446
        %v448 = vsel %vm414, %v393, 0.0
        %449 = vadd.xlane.f32.xlu0 %v448
        %v450 = vpop.xlane.xlu0 %449
        %v451 = vsel %vm414, %v394, 0.0
        %452 = vadd.xlane.f32.xlu0 %v451
        %v453 = vpop.xlane.xlu0 %452
        %v454 = vsel %vm414, %v395, 0.0
        %455 = vadd.xlane.f32.xlu0 %v454
        %v456 = vpop.xlane.xlu0 %455
        %v457 = vsel %vm414, %v396, 0.0
        %458 = vadd.xlane.f32.xlu0 %v457
        %v459 = vpop.xlane.xlu0 %458
        %v460 = vsel %vm414, %v397, 0.0
        %461 = vadd.xlane.f32.xlu0 %v460
        %v462 = vpop.xlane.xlu0 %461
        %v463 = vsel %vm414, %v398, 0.0
        %464 = vadd.xlane.f32.xlu0 %v463
        %v465 = vpop.xlane.xlu0 %464
        %v466 = vsel %vm414, %v399, 0.0
        %467 = vadd.xlane.f32.xlu0 %v466
        %v468 = vpop.xlane.xlu0 %467
        %v469 = vsel %vm414, %v400, 0.0
        %470 = vadd.xlane.f32.xlu0 %v469
        %v471 = vpop.xlane.xlu0 %470
        %v472 = vsel %vm414, %v401, 0.0
        %473 = vadd.xlane.f32.xlu0 %v472
        %v474 = vpop.xlane.xlu0 %473
        %v475 = vsel %vm414, %v402, 0.0
        %476 = vadd.xlane.f32.xlu0 %v475
        %v477 = vpop.xlane.xlu0 %476
        %v478 = vsel %vm414, %v403, 0.0
        %479 = vadd.xlane.f32.xlu0 %v478
        %v480 = vpop.xlane.xlu0 %479
        %v481 = vsel %vm414, %v404, 0.0
        %482 = vadd.xlane.f32.xlu0 %v481
        %v483 = vpop.xlane.xlu0 %482
        %v484 = vsel %vm414, %v405, 0.0
        %485 = vadd.xlane.f32.xlu0 %v484
        %v486 = vpop.xlane.xlu0 %485
        %v487 = vsel %vm414, %v406, 0.0
        %488 = vadd.xlane.f32.xlu0 %v487
        %v489 = vpop.xlane.xlu0 %488
        %v490 = vsel %vm414, %v407, 0.0
        %491 = vadd.xlane.f32.xlu0 %v490
        %v492 = vpop.xlane.xlu0 %491
        %v493 = vsel %vm414, %v408, 0.0
        %494 = vadd.xlane.f32.xlu0 %v493
        %v495 = vpop.xlane.xlu0 %494
        %v496 = vsel %vm414, %v409, 0.0
        %497 = vadd.xlane.f32.xlu0 %v496
        %v498 = vpop.xlane.xlu0 %497
        %v499 = vsel %vm414, %v410, 0.0
        %500 = vadd.xlane.f32.xlu0 %v499
        %v501 = vpop.xlane.xlu0 %500
        %v502 = vsel %vm414, %v411, 0.0
        %503 = vadd.xlane.f32.xlu0 %v502
        %v504 = vpop.xlane.xlu0 %503
        %v505 = vsel %vm414, %v412, 0.0
        %506 = vadd.xlane.f32.xlu0 %v505
        %v507 = vpop.xlane.xlu0 %506
        %v508 = vsel %vm414, %v413, 0.0
        %509 = vadd.xlane.f32.xlu0 %v508
        %v510 = vpop.xlane.xlu0 %509
        %s511 = sld [smem:[#allocation8]]
        %v512 = vld [vmem:[%s195] sm:$0x3]
        %v513 = vstv %s511
        %v514 = vadd.f32 %v513, %v512
        %v515 = vld [vmem:[%s200] sm:$0x3]
        %v516 = vadd.f32 %v514, %v515
        %v549 = vlaneseq
        %v550 = vshrl.u32 %v549, 7
        %v551 = vsub.s32 0, %v550
        %v552 = vrot.slane %v417, %v551
        %v553 = vlaneseq
        %v554 = vshrl.u32 %v553, 7
        %v555 = vsub.s32 1, %v554
        %v556 = vrot.slane %v417, %v555
        %v557 = vlaneseq
        %v558 = vshrl.u32 %v557, 7
        %v559 = vsub.s32 2, %v558
        %v560 = vrot.slane %v417, %v559
        %v561 = vlaneseq
        %v562 = vshrl.u32 %v561, 7
        %v563 = vsub.s32 3, %v562
        %v564 = vrot.slane %v417, %v563
        %v565 = vlaneseq
        %v566 = vshrl.u32 %v565, 7
        %v567 = vsub.s32 4, %v566
        %v568 = vrot.slane %v417, %v567
        %v569 = vlaneseq
        %v570 = vshrl.u32 %v569, 7
        %v571 = vsub.s32 5, %v570
        %v572 = vrot.slane %v417, %v571
        %v573 = vlaneseq
        %v574 = vshrl.u32 %v573, 7
        %v575 = vsub.s32 6, %v574
        %v576 = vrot.slane %v417, %v575
        %v577 = vlaneseq
        %v578 = vshrl.u32 %v577, 7
        %v579 = vsub.s32 7, %v578
        %v580 = vrot.slane %v417, %v579
        %v581 = vlaneseq
        %v582 = vshrl.u32 %v581, 7
        %v583 = vsub.s32 0, %v582
        %v584 = vrot.slane %v420, %v583
        %v585 = vlaneseq
        %v586 = vshrl.u32 %v585, 7
        %v587 = vsub.s32 1, %v586
        %v588 = vrot.slane %v420, %v587
        %v589 = vlaneseq
        %v590 = vshrl.u32 %v589, 7
        %v591 = vsub.s32 2, %v590
        %v592 = vrot.slane %v420, %v591
        %v593 = vlaneseq
        %v594 = vshrl.u32 %v593, 7
        %v595 = vsub.s32 3, %v594
        %v596 = vrot.slane %v420, %v595
        %v597 = vlaneseq
        %v598 = vshrl.u32 %v597, 7
        %v599 = vsub.s32 4, %v598
        %v600 = vrot.slane %v420, %v599
        %v601 = vlaneseq
        %v602 = vshrl.u32 %v601, 7
        %v603 = vsub.s32 5, %v602
        %v604 = vrot.slane %v420, %v603
        %v605 = vlaneseq
        %v606 = vshrl.u32 %v605, 7
        %v607 = vsub.s32 6, %v606
        %v608 = vrot.slane %v420, %v607
        %v609 = vlaneseq
        %v610 = vshrl.u32 %v609, 7
        %v611 = vsub.s32 7, %v610
        %v612 = vrot.slane %v420, %v611
        %v613 = vlaneseq
        %v614 = vshrl.u32 %v613, 7
        %v615 = vsub.s32 0, %v614
        %v616 = vrot.slane %v423, %v615
        %v617 = vlaneseq
        %v618 = vshrl.u32 %v617, 7
        %v619 = vsub.s32 1, %v618
        %v620 = vrot.slane %v423, %v619
        %v621 = vlaneseq
        %v622 = vshrl.u32 %v621, 7
        %v623 = vsub.s32 2, %v622
        %v624 = vrot.slane %v423, %v623
        %v625 = vlaneseq
        %v626 = vshrl.u32 %v625, 7
        %v627 = vsub.s32 3, %v626
        %v628 = vrot.slane %v423, %v627
        %v629 = vlaneseq
        %v630 = vshrl.u32 %v629, 7
        %v631 = vsub.s32 4, %v630
        %v632 = vrot.slane %v423, %v631
        %v633 = vlaneseq
        %v634 = vshrl.u32 %v633, 7
        %v635 = vsub.s32 5, %v634
        %v636 = vrot.slane %v423, %v635
        %v637 = vlaneseq
        %v638 = vshrl.u32 %v637, 7
        %v639 = vsub.s32 6, %v638
        %v640 = vrot.slane %v423, %v639
        %v641 = vlaneseq
        %v642 = vshrl.u32 %v641, 7
        %v643 = vsub.s32 7, %v642
        %v644 = vrot.slane %v423, %v643
        %v645 = vlaneseq
        %v646 = vshrl.u32 %v645, 7
        %v647 = vsub.s32 0, %v646
        %v648 = vrot.slane %v426, %v647
        %v649 = vlaneseq
        %v650 = vshrl.u32 %v649, 7
        %v651 = vsub.s32 1, %v650
        %v652 = vrot.slane %v426, %v651
        %v653 = vlaneseq
        %v654 = vshrl.u32 %v653, 7
        %v655 = vsub.s32 2, %v654
        %v656 = vrot.slane %v426, %v655
        %v657 = vlaneseq
        %v658 = vshrl.u32 %v657, 7
        %v659 = vsub.s32 3, %v658
        %v660 = vrot.slane %v426, %v659
        %v661 = vlaneseq
        %v662 = vshrl.u32 %v661, 7
        %v663 = vsub.s32 4, %v662
        %v664 = vrot.slane %v426, %v663
        %v665 = vlaneseq
        %v666 = vshrl.u32 %v665, 7
        %v667 = vsub.s32 5, %v666
        %v668 = vrot.slane %v426, %v667
        %v669 = vlaneseq
        %v670 = vshrl.u32 %v669, 7
        %v671 = vsub.s32 6, %v670
        %v672 = vrot.slane %v426, %v671
        %v673 = vlaneseq
        %v674 = vshrl.u32 %v673, 7
        %v675 = vsub.s32 7, %v674
        %v676 = vrot.slane %v426, %v675
        %v677 = vlaneseq
        %v678 = vshrl.u32 %v677, 7
        %v679 = vsub.s32 0, %v678
        %v680 = vrot.slane %v429, %v679
        %v681 = vlaneseq
        %v682 = vshrl.u32 %v681, 7
        %v683 = vsub.s32 1, %v682
        %v684 = vrot.slane %v429, %v683
        %v685 = vlaneseq
        %v686 = vshrl.u32 %v685, 7
        %v687 = vsub.s32 2, %v686
        %v688 = vrot.slane %v429, %v687
        %v689 = vlaneseq
        %v690 = vshrl.u32 %v689, 7
        %v691 = vsub.s32 3, %v690
        %v692 = vrot.slane %v429, %v691
        %v693 = vlaneseq
        %v694 = vshrl.u32 %v693, 7
        %v695 = vsub.s32 4, %v694
        %v696 = vrot.slane %v429, %v695
        %v697 = vlaneseq
        %v698 = vshrl.u32 %v697, 7
        %v699 = vsub.s32 5, %v698
        %v700 = vrot.slane %v429, %v699
        %v701 = vlaneseq
        %v702 = vshrl.u32 %v701, 7
        %v703 = vsub.s32 6, %v702
        %v704 = vrot.slane %v429, %v703
        %v705 = vlaneseq
        %v706 = vshrl.u32 %v705, 7
        %v707 = vsub.s32 7, %v706
        %v708 = vrot.slane %v429, %v707
        %v709 = vlaneseq
        %v710 = vshrl.u32 %v709, 7
        %v711 = vsub.s32 0, %v710
        %v712 = vrot.slane %v432, %v711
        %v713 = vlaneseq
        %v714 = vshrl.u32 %v713, 7
        %v715 = vsub.s32 1, %v714
        %v716 = vrot.slane %v432, %v715
        %v717 = vlaneseq
        %v718 = vshrl.u32 %v717, 7
        %v719 = vsub.s32 2, %v718
        %v720 = vrot.slane %v432, %v719
        %v721 = vlaneseq
        %v722 = vshrl.u32 %v721, 7
        %v723 = vsub.s32 3, %v722
        %v724 = vrot.slane %v432, %v723
        %v725 = vlaneseq
        %v726 = vshrl.u32 %v725, 7
        %v727 = vsub.s32 4, %v726
        %v728 = vrot.slane %v432, %v727
        %v729 = vlaneseq
        %v730 = vshrl.u32 %v729, 7
        %v731 = vsub.s32 5, %v730
        %v732 = vrot.slane %v432, %v731
        %v733 = vlaneseq
        %v734 = vshrl.u32 %v733, 7
        %v735 = vsub.s32 6, %v734
        %v736 = vrot.slane %v432, %v735
        %v737 = vlaneseq
        %v738 = vshrl.u32 %v737, 7
        %v739 = vsub.s32 7, %v738
        %v740 = vrot.slane %v432, %v739
        %v741 = vlaneseq
        %v742 = vshrl.u32 %v741, 7
        %v743 = vsub.s32 0, %v742
        %v744 = vrot.slane %v435, %v743
        %v745 = vlaneseq
        %v746 = vshrl.u32 %v745, 7
        %v747 = vsub.s32 1, %v746
        %v748 = vrot.slane %v435, %v747
        %v749 = vlaneseq
        %v750 = vshrl.u32 %v749, 7
        %v751 = vsub.s32 2, %v750
        %v752 = vrot.slane %v435, %v751
        %v753 = vlaneseq
        %v754 = vshrl.u32 %v753, 7
        %v755 = vsub.s32 3, %v754
        %v756 = vrot.slane %v435, %v755
        %v757 = vlaneseq
        %v758 = vshrl.u32 %v757, 7
        %v759 = vsub.s32 4, %v758
        %v760 = vrot.slane %v435, %v759
        %v761 = vlaneseq
        %v762 = vshrl.u32 %v761, 7
        %v763 = vsub.s32 5, %v762
        %v764 = vrot.slane %v435, %v763
        %v765 = vlaneseq
        %v766 = vshrl.u32 %v765, 7
        %v767 = vsub.s32 6, %v766
        %v768 = vrot.slane %v435, %v767
        %v769 = vlaneseq
        %v770 = vshrl.u32 %v769, 7
        %v771 = vsub.s32 7, %v770
        %v772 = vrot.slane %v435, %v771
        %v773 = vlaneseq
        %v774 = vshrl.u32 %v773, 7
        %v775 = vsub.s32 0, %v774
        %v776 = vrot.slane %v438, %v775
        %v777 = vlaneseq
        %v778 = vshrl.u32 %v777, 7
        %v779 = vsub.s32 1, %v778
        %v780 = vrot.slane %v438, %v779
        %v781 = vlaneseq
        %v782 = vshrl.u32 %v781, 7
        %v783 = vsub.s32 2, %v782
        %v784 = vrot.slane %v438, %v783
        %v785 = vlaneseq
        %v786 = vshrl.u32 %v785, 7
        %v787 = vsub.s32 3, %v786
        %v788 = vrot.slane %v438, %v787
        %v789 = vlaneseq
        %v790 = vshrl.u32 %v789, 7
        %v791 = vsub.s32 4, %v790
        %v792 = vrot.slane %v438, %v791
        %v793 = vlaneseq
        %v794 = vshrl.u32 %v793, 7
        %v795 = vsub.s32 5, %v794
        %v796 = vrot.slane %v438, %v795
        %v797 = vlaneseq
        %v798 = vshrl.u32 %v797, 7
        %v799 = vsub.s32 6, %v798
        %v800 = vrot.slane %v438, %v799
        %v801 = vlaneseq
        %v802 = vshrl.u32 %v801, 7
        %v803 = vsub.s32 7, %v802
        %v804 = vrot.slane %v438, %v803
        %v805 = vlaneseq
        %v806 = vshrl.u32 %v805, 7
        %v807 = vsub.s32 0, %v806
        %v808 = vrot.slane %v441, %v807
        %v809 = vlaneseq
        %v810 = vshrl.u32 %v809, 7
        %v811 = vsub.s32 1, %v810
        %v812 = vrot.slane %v441, %v811
        %v813 = vlaneseq
        %v814 = vshrl.u32 %v813, 7
        %v815 = vsub.s32 2, %v814
        %v816 = vrot.slane %v441, %v815
        %v817 = vlaneseq
        %v818 = vshrl.u32 %v817, 7
        %v819 = vsub.s32 3, %v818
        %v820 = vrot.slane %v441, %v819
        %v821 = vlaneseq
        %v822 = vshrl.u32 %v821, 7
        %v823 = vsub.s32 4, %v822
        %v824 = vrot.slane %v441, %v823
        %v825 = vlaneseq
        %v826 = vshrl.u32 %v825, 7
        %v827 = vsub.s32 5, %v826
        %v828 = vrot.slane %v441, %v827
        %v829 = vlaneseq
        %v830 = vshrl.u32 %v829, 7
        %v831 = vsub.s32 6, %v830
        %v832 = vrot.slane %v441, %v831
        %v833 = vlaneseq
        %v834 = vshrl.u32 %v833, 7
        %v835 = vsub.s32 7, %v834
        %v836 = vrot.slane %v441, %v835
        %v837 = vlaneseq
        %v838 = vshrl.u32 %v837, 7
        %v839 = vsub.s32 0, %v838
        %v840 = vrot.slane %v444, %v839
        %v841 = vlaneseq
        %v842 = vshrl.u32 %v841, 7
        %v843 = vsub.s32 1, %v842
        %v844 = vrot.slane %v444, %v843
        %v845 = vlaneseq
        %v846 = vshrl.u32 %v845, 7
        %v847 = vsub.s32 2, %v846
        %v848 = vrot.slane %v444, %v847
        %v849 = vlaneseq
        %v850 = vshrl.u32 %v849, 7
        %v851 = vsub.s32 3, %v850
        %v852 = vrot.slane %v444, %v851
        %v853 = vlaneseq
        %v854 = vshrl.u32 %v853, 7
        %v855 = vsub.s32 4, %v854
        %v856 = vrot.slane %v444, %v855
        %v857 = vlaneseq
        %v858 = vshrl.u32 %v857, 7
        %v859 = vsub.s32 5, %v858
        %v860 = vrot.slane %v444, %v859
        %v861 = vlaneseq
        %v862 = vshrl.u32 %v861, 7
        %v863 = vsub.s32 6, %v862
        %v864 = vrot.slane %v444, %v863
        %v865 = vlaneseq
        %v866 = vshrl.u32 %v865, 7
        %v867 = vsub.s32 7, %v866
        %v868 = vrot.slane %v444, %v867
        %v869 = vlaneseq
        %v870 = vshrl.u32 %v869, 7
        %v871 = vsub.s32 0, %v870
        %v872 = vrot.slane %v447, %v871
        %v873 = vlaneseq
        %v874 = vshrl.u32 %v873, 7
        %v875 = vsub.s32 1, %v874
        %v876 = vrot.slane %v447, %v875
        %v877 = vlaneseq
        %v878 = vshrl.u32 %v877, 7
        %v879 = vsub.s32 2, %v878
        %v880 = vrot.slane %v447, %v879
        %v881 = vlaneseq
        %v882 = vshrl.u32 %v881, 7
        %v883 = vsub.s32 3, %v882
        %v884 = vrot.slane %v447, %v883
        %v885 = vlaneseq
        %v886 = vshrl.u32 %v885, 7
        %v887 = vsub.s32 4, %v886
        %v888 = vrot.slane %v447, %v887
        %v889 = vlaneseq
        %v890 = vshrl.u32 %v889, 7
        %v891 = vsub.s32 5, %v890
        %v892 = vrot.slane %v447, %v891
        %v893 = vlaneseq
        %v894 = vshrl.u32 %v893, 7
        %v895 = vsub.s32 6, %v894
        %v896 = vrot.slane %v447, %v895
        %v897 = vlaneseq
        %v898 = vshrl.u32 %v897, 7
        %v899 = vsub.s32 7, %v898
        %v900 = vrot.slane %v447, %v899
        %v901 = vlaneseq
        %v902 = vshrl.u32 %v901, 7
        %v903 = vsub.s32 0, %v902
        %v904 = vrot.slane %v450, %v903
        %v905 = vlaneseq
        %v906 = vshrl.u32 %v905, 7
        %v907 = vsub.s32 1, %v906
        %v908 = vrot.slane %v450, %v907
        %v909 = vlaneseq
        %v910 = vshrl.u32 %v909, 7
        %v911 = vsub.s32 2, %v910
        %v912 = vrot.slane %v450, %v911
        %v913 = vlaneseq
        %v914 = vshrl.u32 %v913, 7
        %v915 = vsub.s32 3, %v914
        %v916 = vrot.slane %v450, %v915
        %v917 = vlaneseq
        %v918 = vshrl.u32 %v917, 7
        %v919 = vsub.s32 4, %v918
        %v920 = vrot.slane %v450, %v919
        %v921 = vlaneseq
        %v922 = vshrl.u32 %v921, 7
        %v923 = vsub.s32 5, %v922
        %v924 = vrot.slane %v450, %v923
        %v925 = vlaneseq
        %v926 = vshrl.u32 %v925, 7
        %v927 = vsub.s32 6, %v926
        %v928 = vrot.slane %v450, %v927
        %v929 = vlaneseq
        %v930 = vshrl.u32 %v929, 7
        %v931 = vsub.s32 7, %v930
        %v932 = vrot.slane %v450, %v931
        %v933 = vlaneseq
        %v934 = vshrl.u32 %v933, 7
        %v935 = vsub.s32 0, %v934
        %v936 = vrot.slane %v453, %v935
        %v937 = vlaneseq
        %v938 = vshrl.u32 %v937, 7
        %v939 = vsub.s32 1, %v938
        %v940 = vrot.slane %v453, %v939
        %v941 = vlaneseq
        %v942 = vshrl.u32 %v941, 7
        %v943 = vsub.s32 2, %v942
        %v944 = vrot.slane %v453, %v943
        %v945 = vlaneseq
        %v946 = vshrl.u32 %v945, 7
        %v947 = vsub.s32 3, %v946
        %v948 = vrot.slane %v453, %v947
        %v949 = vlaneseq
        %v950 = vshrl.u32 %v949, 7
        %v951 = vsub.s32 4, %v950
        %v952 = vrot.slane %v453, %v951
        %v953 = vlaneseq
        %v954 = vshrl.u32 %v953, 7
        %v955 = vsub.s32 5, %v954
        %v956 = vrot.slane %v453, %v955
        %v957 = vlaneseq
        %v958 = vshrl.u32 %v957, 7
        %v959 = vsub.s32 6, %v958
        %v960 = vrot.slane %v453, %v959
        %v961 = vlaneseq
        %v962 = vshrl.u32 %v961, 7
        %v963 = vsub.s32 7, %v962
        %v964 = vrot.slane %v453, %v963
        %v965 = vlaneseq
        %v966 = vshrl.u32 %v965, 7
        %v967 = vsub.s32 0, %v966
        %v968 = vrot.slane %v456, %v967
        %v969 = vlaneseq
        %v970 = vshrl.u32 %v969, 7
        %v971 = vsub.s32 1, %v970
        %v972 = vrot.slane %v456, %v971
        %v973 = vlaneseq
        %v974 = vshrl.u32 %v973, 7
        %v975 = vsub.s32 2, %v974
        %v976 = vrot.slane %v456, %v975
        %v977 = vlaneseq
        %v978 = vshrl.u32 %v977, 7
        %v979 = vsub.s32 3, %v978
        %v980 = vrot.slane %v456, %v979
        %v981 = vlaneseq
        %v982 = vshrl.u32 %v981, 7
        %v983 = vsub.s32 4, %v982
        %v984 = vrot.slane %v456, %v983
        %v985 = vlaneseq
        %v986 = vshrl.u32 %v985, 7
        %v987 = vsub.s32 5, %v986
        %v988 = vrot.slane %v456, %v987
        %v989 = vlaneseq
        %v990 = vshrl.u32 %v989, 7
        %v991 = vsub.s32 6, %v990
        %v992 = vrot.slane %v456, %v991
        %v993 = vlaneseq
        %v994 = vshrl.u32 %v993, 7
        %v995 = vsub.s32 7, %v994
        %v996 = vrot.slane %v456, %v995
        %v997 = vlaneseq
        %v998 = vshrl.u32 %v997, 7
        %v999 = vsub.s32 0, %v998
        %v1000 = vrot.slane %v459, %v999
        %v1001 = vlaneseq
        %v1002 = vshrl.u32 %v1001, 7
        %v1003 = vsub.s32 1, %v1002
        %v1004 = vrot.slane %v459, %v1003
        %v1005 = vlaneseq
        %v1006 = vshrl.u32 %v1005, 7
        %v1007 = vsub.s32 2, %v1006
        %v1008 = vrot.slane %v459, %v1007
        %v1009 = vlaneseq
        %v1010 = vshrl.u32 %v1009, 7
        %v1011 = vsub.s32 3, %v1010
        %v1012 = vrot.slane %v459, %v1011
        %v1013 = vlaneseq
        %v1014 = vshrl.u32 %v1013, 7
        %v1015 = vsub.s32 4, %v1014
        %v1016 = vrot.slane %v459, %v1015
        %v1017 = vlaneseq
        %v1018 = vshrl.u32 %v1017, 7
        %v1019 = vsub.s32 5, %v1018
        %v1020 = vrot.slane %v459, %v1019
        %v1021 = vlaneseq
        %v1022 = vshrl.u32 %v1021, 7
        %v1023 = vsub.s32 6, %v1022
        %v1024 = vrot.slane %v459, %v1023
        %v1025 = vlaneseq
        %v1026 = vshrl.u32 %v1025, 7
        %v1027 = vsub.s32 7, %v1026
        %v1028 = vrot.slane %v459, %v1027
        %v1029 = vlaneseq
        %v1030 = vshrl.u32 %v1029, 7
        %v1031 = vsub.s32 0, %v1030
        %v1032 = vrot.slane %v462, %v1031
        %v1033 = vlaneseq
        %v1034 = vshrl.u32 %v1033, 7
        %v1035 = vsub.s32 1, %v1034
        %v1036 = vrot.slane %v462, %v1035
        %v1037 = vlaneseq
        %v1038 = vshrl.u32 %v1037, 7
        %v1039 = vsub.s32 2, %v1038
        %v1040 = vrot.slane %v462, %v1039
        %v1041 = vlaneseq
        %v1042 = vshrl.u32 %v1041, 7
        %v1043 = vsub.s32 3, %v1042
        %v1044 = vrot.slane %v462, %v1043
        %v1045 = vlaneseq
        %v1046 = vshrl.u32 %v1045, 7
        %v1047 = vsub.s32 4, %v1046
        %v1048 = vrot.slane %v462, %v1047
        %v1049 = vlaneseq
        %v1050 = vshrl.u32 %v1049, 7
        %v1051 = vsub.s32 5, %v1050
        %v1052 = vrot.slane %v462, %v1051
        %v1053 = vlaneseq
        %v1054 = vshrl.u32 %v1053, 7
        %v1055 = vsub.s32 6, %v1054
        %v1056 = vrot.slane %v462, %v1055
        %v1057 = vlaneseq
        %v1058 = vshrl.u32 %v1057, 7
        %v1059 = vsub.s32 7, %v1058
        %v1060 = vrot.slane %v462, %v1059
        %v1061 = vlaneseq
        %v1062 = vshrl.u32 %v1061, 7
        %v1063 = vsub.s32 0, %v1062
        %v1064 = vrot.slane %v465, %v1063
        %v1065 = vlaneseq
        %v1066 = vshrl.u32 %v1065, 7
        %v1067 = vsub.s32 1, %v1066
        %v1068 = vrot.slane %v465, %v1067
        %v1069 = vlaneseq
        %v1070 = vshrl.u32 %v1069, 7
        %v1071 = vsub.s32 2, %v1070
        %v1072 = vrot.slane %v465, %v1071
        %v1073 = vlaneseq
        %v1074 = vshrl.u32 %v1073, 7
        %v1075 = vsub.s32 3, %v1074
        %v1076 = vrot.slane %v465, %v1075
        %v1077 = vlaneseq
        %v1078 = vshrl.u32 %v1077, 7
        %v1079 = vsub.s32 4, %v1078
        %v1080 = vrot.slane %v465, %v1079
        %v1081 = vlaneseq
        %v1082 = vshrl.u32 %v1081, 7
        %v1083 = vsub.s32 5, %v1082
        %v1084 = vrot.slane %v465, %v1083
        %v1085 = vlaneseq
        %v1086 = vshrl.u32 %v1085, 7
        %v1087 = vsub.s32 6, %v1086
        %v1088 = vrot.slane %v465, %v1087
        %v1089 = vlaneseq
        %v1090 = vshrl.u32 %v1089, 7
        %v1091 = vsub.s32 7, %v1090
        %v1092 = vrot.slane %v465, %v1091
        %v1093 = vlaneseq
        %v1094 = vshrl.u32 %v1093, 7
        %v1095 = vsub.s32 0, %v1094
        %v1096 = vrot.slane %v468, %v1095
        %v1097 = vlaneseq
        %v1098 = vshrl.u32 %v1097, 7
        %v1099 = vsub.s32 1, %v1098
        %v1100 = vrot.slane %v468, %v1099
        %v1101 = vlaneseq
        %v1102 = vshrl.u32 %v1101, 7
        %v1103 = vsub.s32 2, %v1102
        %v1104 = vrot.slane %v468, %v1103
        %v1105 = vlaneseq
        %v1106 = vshrl.u32 %v1105, 7
        %v1107 = vsub.s32 3, %v1106
        %v1108 = vrot.slane %v468, %v1107
        %v1109 = vlaneseq
        %v1110 = vshrl.u32 %v1109, 7
        %v1111 = vsub.s32 4, %v1110
        %v1112 = vrot.slane %v468, %v1111
        %v1113 = vlaneseq
        %v1114 = vshrl.u32 %v1113, 7
        %v1115 = vsub.s32 5, %v1114
        %v1116 = vrot.slane %v468, %v1115
        %v1117 = vlaneseq
        %v1118 = vshrl.u32 %v1117, 7
        %v1119 = vsub.s32 6, %v1118
        %v1120 = vrot.slane %v468, %v1119
        %v1121 = vlaneseq
        %v1122 = vshrl.u32 %v1121, 7
        %v1123 = vsub.s32 7, %v1122
        %v1124 = vrot.slane %v468, %v1123
        %v1125 = vlaneseq
        %v1126 = vshrl.u32 %v1125, 7
        %v1127 = vsub.s32 0, %v1126
        %v1128 = vrot.slane %v471, %v1127
        %v1129 = vlaneseq
        %v1130 = vshrl.u32 %v1129, 7
        %v1131 = vsub.s32 1, %v1130
        %v1132 = vrot.slane %v471, %v1131
        %v1133 = vlaneseq
        %v1134 = vshrl.u32 %v1133, 7
        %v1135 = vsub.s32 2, %v1134
        %v1136 = vrot.slane %v471, %v1135
        %v1137 = vlaneseq
        %v1138 = vshrl.u32 %v1137, 7
        %v1139 = vsub.s32 3, %v1138
        %v1140 = vrot.slane %v471, %v1139
        %v1141 = vlaneseq
        %v1142 = vshrl.u32 %v1141, 7
        %v1143 = vsub.s32 4, %v1142
        %v1144 = vrot.slane %v471, %v1143
        %v1145 = vlaneseq
        %v1146 = vshrl.u32 %v1145, 7
        %v1147 = vsub.s32 5, %v1146
        %v1148 = vrot.slane %v471, %v1147
        %v1149 = vlaneseq
        %v1150 = vshrl.u32 %v1149, 7
        %v1151 = vsub.s32 6, %v1150
        %v1152 = vrot.slane %v471, %v1151
        %v1153 = vlaneseq
        %v1154 = vshrl.u32 %v1153, 7
        %v1155 = vsub.s32 7, %v1154
        %v1156 = vrot.slane %v471, %v1155
        %v1157 = vlaneseq
        %v1158 = vshrl.u32 %v1157, 7
        %v1159 = vsub.s32 0, %v1158
        %v1160 = vrot.slane %v474, %v1159
        %v1161 = vlaneseq
        %v1162 = vshrl.u32 %v1161, 7
        %v1163 = vsub.s32 1, %v1162
        %v1164 = vrot.slane %v474, %v1163
        %v1165 = vlaneseq
        %v1166 = vshrl.u32 %v1165, 7
        %v1167 = vsub.s32 2, %v1166
        %v1168 = vrot.slane %v474, %v1167
        %v1169 = vlaneseq
        %v1170 = vshrl.u32 %v1169, 7
        %v1171 = vsub.s32 3, %v1170
        %v1172 = vrot.slane %v474, %v1171
        %v1173 = vlaneseq
        %v1174 = vshrl.u32 %v1173, 7
        %v1175 = vsub.s32 4, %v1174
        %v1176 = vrot.slane %v474, %v1175
        %v1177 = vlaneseq
        %v1178 = vshrl.u32 %v1177, 7
        %v1179 = vsub.s32 5, %v1178
        %v1180 = vrot.slane %v474, %v1179
        %v1181 = vlaneseq
        %v1182 = vshrl.u32 %v1181, 7
        %v1183 = vsub.s32 6, %v1182
        %v1184 = vrot.slane %v474, %v1183
        %v1185 = vlaneseq
        %v1186 = vshrl.u32 %v1185, 7
        %v1187 = vsub.s32 7, %v1186
        %v1188 = vrot.slane %v474, %v1187
        %v1189 = vlaneseq
        %v1190 = vshrl.u32 %v1189, 7
        %v1191 = vsub.s32 0, %v1190
        %v1192 = vrot.slane %v477, %v1191
        %v1193 = vlaneseq
        %v1194 = vshrl.u32 %v1193, 7
        %v1195 = vsub.s32 1, %v1194
        %v1196 = vrot.slane %v477, %v1195
        %v1197 = vlaneseq
        %v1198 = vshrl.u32 %v1197, 7
        %v1199 = vsub.s32 2, %v1198
        %v1200 = vrot.slane %v477, %v1199
        %v1201 = vlaneseq
        %v1202 = vshrl.u32 %v1201, 7
        %v1203 = vsub.s32 3, %v1202
        %v1204 = vrot.slane %v477, %v1203
        %v1205 = vlaneseq
        %v1206 = vshrl.u32 %v1205, 7
        %v1207 = vsub.s32 4, %v1206
        %v1208 = vrot.slane %v477, %v1207
        %v1209 = vlaneseq
        %v1210 = vshrl.u32 %v1209, 7
        %v1211 = vsub.s32 5, %v1210
        %v1212 = vrot.slane %v477, %v1211
        %v1213 = vlaneseq
        %v1214 = vshrl.u32 %v1213, 7
        %v1215 = vsub.s32 6, %v1214
        %v1216 = vrot.slane %v477, %v1215
        %v1217 = vlaneseq
        %v1218 = vshrl.u32 %v1217, 7
        %v1219 = vsub.s32 7, %v1218
        %v1220 = vrot.slane %v477, %v1219
        %v1221 = vlaneseq
        %v1222 = vshrl.u32 %v1221, 7
        %v1223 = vsub.s32 0, %v1222
        %v1224 = vrot.slane %v480, %v1223
        %v1225 = vlaneseq
        %v1226 = vshrl.u32 %v1225, 7
        %v1227 = vsub.s32 1, %v1226
        %v1228 = vrot.slane %v480, %v1227
        %v1229 = vlaneseq
        %v1230 = vshrl.u32 %v1229, 7
        %v1231 = vsub.s32 2, %v1230
        %v1232 = vrot.slane %v480, %v1231
        %v1233 = vlaneseq
        %v1234 = vshrl.u32 %v1233, 7
        %v1235 = vsub.s32 3, %v1234
        %v1236 = vrot.slane %v480, %v1235
        %v1237 = vlaneseq
        %v1238 = vshrl.u32 %v1237, 7
        %v1239 = vsub.s32 4, %v1238
        %v1240 = vrot.slane %v480, %v1239
        %v1241 = vlaneseq
        %v1242 = vshrl.u32 %v1241, 7
        %v1243 = vsub.s32 5, %v1242
        %v1244 = vrot.slane %v480, %v1243
        %v1245 = vlaneseq
        %v1246 = vshrl.u32 %v1245, 7
        %v1247 = vsub.s32 6, %v1246
        %v1248 = vrot.slane %v480, %v1247
        %v1249 = vlaneseq
        %v1250 = vshrl.u32 %v1249, 7
        %v1251 = vsub.s32 7, %v1250
        %v1252 = vrot.slane %v480, %v1251
        %v1253 = vlaneseq
        %v1254 = vshrl.u32 %v1253, 7
        %v1255 = vsub.s32 0, %v1254
        %v1256 = vrot.slane %v483, %v1255
        %v1257 = vlaneseq
        %v1258 = vshrl.u32 %v1257, 7
        %v1259 = vsub.s32 1, %v1258
        %v1260 = vrot.slane %v483, %v1259
        %v1261 = vlaneseq
        %v1262 = vshrl.u32 %v1261, 7
        %v1263 = vsub.s32 2, %v1262
        %v1264 = vrot.slane %v483, %v1263
        %v1265 = vlaneseq
        %v1266 = vshrl.u32 %v1265, 7
        %v1267 = vsub.s32 3, %v1266
        %v1268 = vrot.slane %v483, %v1267
        %v1269 = vlaneseq
        %v1270 = vshrl.u32 %v1269, 7
        %v1271 = vsub.s32 4, %v1270
        %v1272 = vrot.slane %v483, %v1271
        %v1273 = vlaneseq
        %v1274 = vshrl.u32 %v1273, 7
        %v1275 = vsub.s32 5, %v1274
        %v1276 = vrot.slane %v483, %v1275
        %v1277 = vlaneseq
        %v1278 = vshrl.u32 %v1277, 7
        %v1279 = vsub.s32 6, %v1278
        %v1280 = vrot.slane %v483, %v1279
        %v1281 = vlaneseq
        %v1282 = vshrl.u32 %v1281, 7
        %v1283 = vsub.s32 7, %v1282
        %v1284 = vrot.slane %v483, %v1283
        %v1285 = vlaneseq
        %v1286 = vshrl.u32 %v1285, 7
        %v1287 = vsub.s32 0, %v1286
        %v1288 = vrot.slane %v486, %v1287
        %v1289 = vlaneseq
        %v1290 = vshrl.u32 %v1289, 7
        %v1291 = vsub.s32 1, %v1290
        %v1292 = vrot.slane %v486, %v1291
        %v1293 = vlaneseq
        %v1294 = vshrl.u32 %v1293, 7
        %v1295 = vsub.s32 2, %v1294
        %v1296 = vrot.slane %v486, %v1295
        %v1297 = vlaneseq
        %v1298 = vshrl.u32 %v1297, 7
        %v1299 = vsub.s32 3, %v1298
        %v1300 = vrot.slane %v486, %v1299
        %v1301 = vlaneseq
        %v1302 = vshrl.u32 %v1301, 7
        %v1303 = vsub.s32 4, %v1302
        %v1304 = vrot.slane %v486, %v1303
        %v1305 = vlaneseq
        %v1306 = vshrl.u32 %v1305, 7
        %v1307 = vsub.s32 5, %v1306
        %v1308 = vrot.slane %v486, %v1307
        %v1309 = vlaneseq
        %v1310 = vshrl.u32 %v1309, 7
        %v1311 = vsub.s32 6, %v1310
        %v1312 = vrot.slane %v486, %v1311
        %v1313 = vlaneseq
        %v1314 = vshrl.u32 %v1313, 7
        %v1315 = vsub.s32 7, %v1314
        %v1316 = vrot.slane %v486, %v1315
        %v1317 = vlaneseq
        %v1318 = vshrl.u32 %v1317, 7
        %v1319 = vsub.s32 0, %v1318
        %v1320 = vrot.slane %v489, %v1319
        %v1321 = vlaneseq
        %v1322 = vshrl.u32 %v1321, 7
        %v1323 = vsub.s32 1, %v1322
        %v1324 = vrot.slane %v489, %v1323
        %v1325 = vlaneseq
        %v1326 = vshrl.u32 %v1325, 7
        %v1327 = vsub.s32 2, %v1326
        %v1328 = vrot.slane %v489, %v1327
        %v1329 = vlaneseq
        %v1330 = vshrl.u32 %v1329, 7
        %v1331 = vsub.s32 3, %v1330
        %v1332 = vrot.slane %v489, %v1331
        %v1333 = vlaneseq
        %v1334 = vshrl.u32 %v1333, 7
        %v1335 = vsub.s32 4, %v1334
        %v1336 = vrot.slane %v489, %v1335
        %v1337 = vlaneseq
        %v1338 = vshrl.u32 %v1337, 7
        %v1339 = vsub.s32 5, %v1338
        %v1340 = vrot.slane %v489, %v1339
        %v1341 = vlaneseq
        %v1342 = vshrl.u32 %v1341, 7
        %v1343 = vsub.s32 6, %v1342
        %v1344 = vrot.slane %v489, %v1343
        %v1345 = vlaneseq
        %v1346 = vshrl.u32 %v1345, 7
        %v1347 = vsub.s32 7, %v1346
        %v1348 = vrot.slane %v489, %v1347
        %v1349 = vlaneseq
        %v1350 = vshrl.u32 %v1349, 7
        %v1351 = vsub.s32 0, %v1350
        %v1352 = vrot.slane %v492, %v1351
        %v1353 = vlaneseq
        %v1354 = vshrl.u32 %v1353, 7
        %v1355 = vsub.s32 1, %v1354
        %v1356 = vrot.slane %v492, %v1355
        %v1357 = vlaneseq
        %v1358 = vshrl.u32 %v1357, 7
        %v1359 = vsub.s32 2, %v1358
        %v1360 = vrot.slane %v492, %v1359
        %v1361 = vlaneseq
        %v1362 = vshrl.u32 %v1361, 7
        %v1363 = vsub.s32 3, %v1362
        %v1364 = vrot.slane %v492, %v1363
        %v1365 = vlaneseq
        %v1366 = vshrl.u32 %v1365, 7
        %v1367 = vsub.s32 4, %v1366
        %v1368 = vrot.slane %v492, %v1367
        %v1369 = vlaneseq
        %v1370 = vshrl.u32 %v1369, 7
        %v1371 = vsub.s32 5, %v1370
        %v1372 = vrot.slane %v492, %v1371
        %v1373 = vlaneseq
        %v1374 = vshrl.u32 %v1373, 7
        %v1375 = vsub.s32 6, %v1374
        %v1376 = vrot.slane %v492, %v1375
        %v1377 = vlaneseq
        %v1378 = vshrl.u32 %v1377, 7
        %v1379 = vsub.s32 7, %v1378
        %v1380 = vrot.slane %v492, %v1379
        %v1381 = vlaneseq
        %v1382 = vshrl.u32 %v1381, 7
        %v1383 = vsub.s32 0, %v1382
        %v1384 = vrot.slane %v495, %v1383
        %v1385 = vlaneseq
        %v1386 = vshrl.u32 %v1385, 7
        %v1387 = vsub.s32 1, %v1386
        %v1388 = vrot.slane %v495, %v1387
        %v1389 = vlaneseq
        %v1390 = vshrl.u32 %v1389, 7
        %v1391 = vsub.s32 2, %v1390
        %v1392 = vrot.slane %v495, %v1391
        %v1393 = vlaneseq
        %v1394 = vshrl.u32 %v1393, 7
        %v1395 = vsub.s32 3, %v1394
        %v1396 = vrot.slane %v495, %v1395
        %v1397 = vlaneseq
        %v1398 = vshrl.u32 %v1397, 7
        %v1399 = vsub.s32 4, %v1398
        %v1400 = vrot.slane %v495, %v1399
        %v1401 = vlaneseq
        %v1402 = vshrl.u32 %v1401, 7
        %v1403 = vsub.s32 5, %v1402
        %v1404 = vrot.slane %v495, %v1403
        %v1405 = vlaneseq
        %v1406 = vshrl.u32 %v1405, 7
        %v1407 = vsub.s32 6, %v1406
        %v1408 = vrot.slane %v495, %v1407
        %v1409 = vlaneseq
        %v1410 = vshrl.u32 %v1409, 7
        %v1411 = vsub.s32 7, %v1410
        %v1412 = vrot.slane %v495, %v1411
        %v1413 = vlaneseq
        %v1414 = vshrl.u32 %v1413, 7
        %v1415 = vsub.s32 0, %v1414
        %v1416 = vrot.slane %v498, %v1415
        %v1417 = vlaneseq
        %v1418 = vshrl.u32 %v1417, 7
        %v1419 = vsub.s32 1, %v1418
        %v1420 = vrot.slane %v498, %v1419
        %v1421 = vlaneseq
        %v1422 = vshrl.u32 %v1421, 7
        %v1423 = vsub.s32 2, %v1422
        %v1424 = vrot.slane %v498, %v1423
        %v1425 = vlaneseq
        %v1426 = vshrl.u32 %v1425, 7
        %v1427 = vsub.s32 3, %v1426
        %v1428 = vrot.slane %v498, %v1427
        %v1429 = vlaneseq
        %v1430 = vshrl.u32 %v1429, 7
        %v1431 = vsub.s32 4, %v1430
        %v1432 = vrot.slane %v498, %v1431
        %v1433 = vlaneseq
        %v1434 = vshrl.u32 %v1433, 7
        %v1435 = vsub.s32 5, %v1434
        %v1436 = vrot.slane %v498, %v1435
        %v1437 = vlaneseq
        %v1438 = vshrl.u32 %v1437, 7
        %v1439 = vsub.s32 6, %v1438
        %v1440 = vrot.slane %v498, %v1439
        %v1441 = vlaneseq
        %v1442 = vshrl.u32 %v1441, 7
        %v1443 = vsub.s32 7, %v1442
        %v1444 = vrot.slane %v498, %v1443
        %v1445 = vlaneseq
        %v1446 = vshrl.u32 %v1445, 7
        %v1447 = vsub.s32 0, %v1446
        %v1448 = vrot.slane %v501, %v1447
        %v1449 = vlaneseq
        %v1450 = vshrl.u32 %v1449, 7
        %v1451 = vsub.s32 1, %v1450
        %v1452 = vrot.slane %v501, %v1451
        %v1453 = vlaneseq
        %v1454 = vshrl.u32 %v1453, 7
        %v1455 = vsub.s32 2, %v1454
        %v1456 = vrot.slane %v501, %v1455
        %v1457 = vlaneseq
        %v1458 = vshrl.u32 %v1457, 7
        %v1459 = vsub.s32 3, %v1458
        %v1460 = vrot.slane %v501, %v1459
        %v1461 = vlaneseq
        %v1462 = vshrl.u32 %v1461, 7
        %v1463 = vsub.s32 4, %v1462
        %v1464 = vrot.slane %v501, %v1463
        %v1465 = vlaneseq
        %v1466 = vshrl.u32 %v1465, 7
        %v1467 = vsub.s32 5, %v1466
        %v1468 = vrot.slane %v501, %v1467
        %v1469 = vlaneseq
        %v1470 = vshrl.u32 %v1469, 7
        %v1471 = vsub.s32 6, %v1470
        %v1472 = vrot.slane %v501, %v1471
        %v1473 = vlaneseq
        %v1474 = vshrl.u32 %v1473, 7
        %v1475 = vsub.s32 7, %v1474
        %v1476 = vrot.slane %v501, %v1475
        %v1477 = vlaneseq
        %v1478 = vshrl.u32 %v1477, 7
        %v1479 = vsub.s32 0, %v1478
        %v1480 = vrot.slane %v504, %v1479
        %v1481 = vlaneseq
        %v1482 = vshrl.u32 %v1481, 7
        %v1483 = vsub.s32 1, %v1482
        %v1484 = vrot.slane %v504, %v1483
        %v1485 = vlaneseq
        %v1486 = vshrl.u32 %v1485, 7
        %v1487 = vsub.s32 2, %v1486
        %v1488 = vrot.slane %v504, %v1487
        %v1489 = vlaneseq
        %v1490 = vshrl.u32 %v1489, 7
        %v1491 = vsub.s32 3, %v1490
        %v1492 = vrot.slane %v504, %v1491
        %v1493 = vlaneseq
        %v1494 = vshrl.u32 %v1493, 7
        %v1495 = vsub.s32 4, %v1494
        %v1496 = vrot.slane %v504, %v1495
        %v1497 = vlaneseq
        %v1498 = vshrl.u32 %v1497, 7
        %v1499 = vsub.s32 5, %v1498
        %v1500 = vrot.slane %v504, %v1499
        %v1501 = vlaneseq
        %v1502 = vshrl.u32 %v1501, 7
        %v1503 = vsub.s32 6, %v1502
        %v1504 = vrot.slane %v504, %v1503
        %v1505 = vlaneseq
        %v1506 = vshrl.u32 %v1505, 7
        %v1507 = vsub.s32 7, %v1506
        %v1508 = vrot.slane %v504, %v1507
        %v1509 = vlaneseq
        %v1510 = vshrl.u32 %v1509, 7
        %v1511 = vsub.s32 0, %v1510
        %v1512 = vrot.slane %v507, %v1511
        %v1513 = vlaneseq
        %v1514 = vshrl.u32 %v1513, 7
        %v1515 = vsub.s32 1, %v1514
        %v1516 = vrot.slane %v507, %v1515
        %v1517 = vlaneseq
        %v1518 = vshrl.u32 %v1517, 7
        %v1519 = vsub.s32 2, %v1518
        %v1520 = vrot.slane %v507, %v1519
        %v1521 = vlaneseq
        %v1522 = vshrl.u32 %v1521, 7
        %v1523 = vsub.s32 3, %v1522
        %v1524 = vrot.slane %v507, %v1523
        %v1525 = vlaneseq
        %v1526 = vshrl.u32 %v1525, 7
        %v1527 = vsub.s32 4, %v1526
        %v1528 = vrot.slane %v507, %v1527
        %v1529 = vlaneseq
        %v1530 = vshrl.u32 %v1529, 7
        %v1531 = vsub.s32 5, %v1530
        %v1532 = vrot.slane %v507, %v1531
        %v1533 = vlaneseq
        %v1534 = vshrl.u32 %v1533, 7
        %v1535 = vsub.s32 6, %v1534
        %v1536 = vrot.slane %v507, %v1535
        %v1537 = vlaneseq
        %v1538 = vshrl.u32 %v1537, 7
        %v1539 = vsub.s32 7, %v1538
        %v1540 = vrot.slane %v507, %v1539
        %v1541 = vlaneseq
        %v1542 = vshrl.u32 %v1541, 7
        %v1543 = vsub.s32 0, %v1542
        %v1544 = vrot.slane %v510, %v1543
        %v1545 = vlaneseq
        %v1546 = vshrl.u32 %v1545, 7
        %v1547 = vsub.s32 1, %v1546
        %v1548 = vrot.slane %v510, %v1547
        %v1549 = vlaneseq
        %v1550 = vshrl.u32 %v1549, 7
        %v1551 = vsub.s32 2, %v1550
        %v1552 = vrot.slane %v510, %v1551
        %v1553 = vlaneseq
        %v1554 = vshrl.u32 %v1553, 7
        %v1555 = vsub.s32 3, %v1554
        %v1556 = vrot.slane %v510, %v1555
        %v1557 = vlaneseq
        %v1558 = vshrl.u32 %v1557, 7
        %v1559 = vsub.s32 4, %v1558
        %v1560 = vrot.slane %v510, %v1559
        %v1561 = vlaneseq
        %v1562 = vshrl.u32 %v1561, 7
        %v1563 = vsub.s32 5, %v1562
        %v1564 = vrot.slane %v510, %v1563
        %v1565 = vlaneseq
        %v1566 = vshrl.u32 %v1565, 7
        %v1567 = vsub.s32 6, %v1566
        %v1568 = vrot.slane %v510, %v1567
        %v1569 = vlaneseq
        %v1570 = vshrl.u32 %v1569, 7
        %v1571 = vsub.s32 7, %v1570
        %v1572 = vrot.slane %v510, %v1571
        %v1573 = vcombine.low %v552, %v556
        %v1574 = vcombine.low %v560, %v564
        %v1575 = vcombine.low %v568, %v572
        %v1576 = vcombine.low %v576, %v580
        %v1578 = vunpack.c.l.s4 1966171168
        %v1579 = vunpack.c.0.s8 %v1578
        %v1580 = vlaneseq
        %v1581 = vshrl.u32 %v1580, 7
        %v1582 = vsub.s32 %v1579, %v1581
        %v1583 = vrot.slane %v1573, %v1582
        %v1585 = vunpack.c.l.s4 1966171168
        %v1586 = vunpack.c.0.s8 %v1585
        %v1587 = vlaneseq
        %v1588 = vshrl.u32 %v1587, 7
        %v1589 = vsub.s32 %v1586, %v1588
        %v1590 = vrot.slane %v1574, %v1589
        %v1592 = vunpack.c.l.s4 1966171168
        %v1593 = vunpack.c.0.s8 %v1592
        %v1594 = vlaneseq
        %v1595 = vshrl.u32 %v1594, 7
        %v1596 = vsub.s32 %v1593, %v1595
        %v1597 = vrot.slane %v1575, %v1596
        %v1599 = vunpack.c.l.s4 1966171168
        %v1600 = vunpack.c.0.s8 %v1599
        %v1601 = vlaneseq
        %v1602 = vshrl.u32 %v1601, 7
        %v1603 = vsub.s32 %v1600, %v1602
        %v1604 = vrot.slane %v1576, %v1603
        %v1605 = vcombine.low %v1583, %v1590
        %v1606 = vcombine.low %v1597, %v1604
        %v1608 = vunpack.c.l.s4 1966171168
        %v1609 = vunpack.c.0.s8 %v1608
        %v1610 = vlaneseq
        %v1611 = vshrl.u32 %v1610, 7
        %v1612 = vsub.s32 %v1609, %v1611
        %v1613 = vrot.slane %v1605, %v1612
        %v1615 = vunpack.c.l.s4 1966171168
        %v1616 = vunpack.c.0.s8 %v1615
        %v1617 = vlaneseq
        %v1618 = vshrl.u32 %v1617, 7
        %v1619 = vsub.s32 %v1616, %v1618
        %v1620 = vrot.slane %v1606, %v1619
        %v1621 = vcombine.low %v1613, %v1620
        %v1622 = vcombine.low %v584, %v588
        %v1623 = vcombine.low %v592, %v596
        %v1624 = vcombine.low %v600, %v604
        %v1625 = vcombine.low %v608, %v612
        %v1627 = vunpack.c.l.s4 1966171168
        %v1628 = vunpack.c.0.s8 %v1627
        %v1629 = vlaneseq
        %v1630 = vshrl.u32 %v1629, 7
        %v1631 = vsub.s32 %v1628, %v1630
        %v1632 = vrot.slane %v1622, %v1631
        %v1634 = vunpack.c.l.s4 1966171168
        %v1635 = vunpack.c.0.s8 %v1634
        %v1636 = vlaneseq
        %v1637 = vshrl.u32 %v1636, 7
        %v1638 = vsub.s32 %v1635, %v1637
        %v1639 = vrot.slane %v1623, %v1638
        %v1641 = vunpack.c.l.s4 1966171168
        %v1642 = vunpack.c.0.s8 %v1641
        %v1643 = vlaneseq
        %v1644 = vshrl.u32 %v1643, 7
        %v1645 = vsub.s32 %v1642, %v1644
        %v1646 = vrot.slane %v1624, %v1645
        %v1648 = vunpack.c.l.s4 1966171168
        %v1649 = vunpack.c.0.s8 %v1648
        %v1650 = vlaneseq
        %v1651 = vshrl.u32 %v1650, 7
        %v1652 = vsub.s32 %v1649, %v1651
        %v1653 = vrot.slane %v1625, %v1652
        %v1654 = vcombine.low %v1632, %v1639
        %v1655 = vcombine.low %v1646, %v1653
        %v1657 = vunpack.c.l.s4 1966171168
        %v1658 = vunpack.c.0.s8 %v1657
        %v1659 = vlaneseq
        %v1660 = vshrl.u32 %v1659, 7
        %v1661 = vsub.s32 %v1658, %v1660
        %v1662 = vrot.slane %v1654, %v1661
        %v1664 = vunpack.c.l.s4 1966171168
        %v1665 = vunpack.c.0.s8 %v1664
        %v1666 = vlaneseq
        %v1667 = vshrl.u32 %v1666, 7
        %v1668 = vsub.s32 %v1665, %v1667
        %v1669 = vrot.slane %v1655, %v1668
        %v1670 = vcombine.low %v1662, %v1669
        %v1671 = vcombine.low %v616, %v620
        %v1672 = vcombine.low %v624, %v628
        %v1673 = vcombine.low %v632, %v636
        %v1674 = vcombine.low %v640, %v644
        %v1676 = vunpack.c.l.s4 1966171168
        %v1677 = vunpack.c.0.s8 %v1676
        %v1678 = vlaneseq
        %v1679 = vshrl.u32 %v1678, 7
        %v1680 = vsub.s32 %v1677, %v1679
        %v1681 = vrot.slane %v1671, %v1680
        %v1683 = vunpack.c.l.s4 1966171168
        %v1684 = vunpack.c.0.s8 %v1683
        %v1685 = vlaneseq
        %v1686 = vshrl.u32 %v1685, 7
        %v1687 = vsub.s32 %v1684, %v1686
        %v1688 = vrot.slane %v1672, %v1687
        %v1690 = vunpack.c.l.s4 1966171168
        %v1691 = vunpack.c.0.s8 %v1690
        %v1692 = vlaneseq
        %v1693 = vshrl.u32 %v1692, 7
        %v1694 = vsub.s32 %v1691, %v1693
        %v1695 = vrot.slane %v1673, %v1694
        %v1697 = vunpack.c.l.s4 1966171168
        %v1698 = vunpack.c.0.s8 %v1697
        %v1699 = vlaneseq
        %v1700 = vshrl.u32 %v1699, 7
        %v1701 = vsub.s32 %v1698, %v1700
        %v1702 = vrot.slane %v1674, %v1701
        %v1703 = vcombine.low %v1681, %v1688
        %v1704 = vcombine.low %v1695, %v1702
        %v1706 = vunpack.c.l.s4 1966171168
        %v1707 = vunpack.c.0.s8 %v1706
        %v1708 = vlaneseq
        %v1709 = vshrl.u32 %v1708, 7
        %v1710 = vsub.s32 %v1707, %v1709
        %v1711 = vrot.slane %v1703, %v1710
        %v1713 = vunpack.c.l.s4 1966171168
        %v1714 = vunpack.c.0.s8 %v1713
        %v1715 = vlaneseq
        %v1716 = vshrl.u32 %v1715, 7
        %v1717 = vsub.s32 %v1714, %v1716
        %v1718 = vrot.slane %v1704, %v1717
        %v1719 = vcombine.low %v1711, %v1718
        %v1720 = vcombine.low %v648, %v652
        %v1721 = vcombine.low %v656, %v660
        %v1722 = vcombine.low %v664, %v668
        %v1723 = vcombine.low %v672, %v676
        %v1725 = vunpack.c.l.s4 1966171168
        %v1726 = vunpack.c.0.s8 %v1725
        %v1727 = vlaneseq
        %v1728 = vshrl.u32 %v1727, 7
        %v1729 = vsub.s32 %v1726, %v1728
        %v1730 = vrot.slane %v1720, %v1729
        %v1732 = vunpack.c.l.s4 1966171168
        %v1733 = vunpack.c.0.s8 %v1732
        %v1734 = vlaneseq
        %v1735 = vshrl.u32 %v1734, 7
        %v1736 = vsub.s32 %v1733, %v1735
        %v1737 = vrot.slane %v1721, %v1736
        %v1739 = vunpack.c.l.s4 1966171168
        %v1740 = vunpack.c.0.s8 %v1739
        %v1741 = vlaneseq
        %v1742 = vshrl.u32 %v1741, 7
        %v1743 = vsub.s32 %v1740, %v1742
        %v1744 = vrot.slane %v1722, %v1743
        %v1746 = vunpack.c.l.s4 1966171168
        %v1747 = vunpack.c.0.s8 %v1746
        %v1748 = vlaneseq
        %v1749 = vshrl.u32 %v1748, 7
        %v1750 = vsub.s32 %v1747, %v1749
        %v1751 = vrot.slane %v1723, %v1750
        %v1752 = vcombine.low %v1730, %v1737
        %v1753 = vcombine.low %v1744, %v1751
        %v1755 = vunpack.c.l.s4 1966171168
        %v1756 = vunpack.c.0.s8 %v1755
        %v1757 = vlaneseq
        %v1758 = vshrl.u32 %v1757, 7
        %v1759 = vsub.s32 %v1756, %v1758
        %v1760 = vrot.slane %v1752, %v1759
        %v1762 = vunpack.c.l.s4 1966171168
        %v1763 = vunpack.c.0.s8 %v1762
        %v1764 = vlaneseq
        %v1765 = vshrl.u32 %v1764, 7
        %v1766 = vsub.s32 %v1763, %v1765
        %v1767 = vrot.slane %v1753, %v1766
        %v1768 = vcombine.low %v1760, %v1767
        %v1769 = vcombine.low %v680, %v684
        %v1770 = vcombine.low %v688, %v692
        %v1771 = vcombine.low %v696, %v700
        %v1772 = vcombine.low %v704, %v708
        %v1774 = vunpack.c.l.s4 1966171168
        %v1775 = vunpack.c.0.s8 %v1774
        %v1776 = vlaneseq
        %v1777 = vshrl.u32 %v1776, 7
        %v1778 = vsub.s32 %v1775, %v1777
        %v1779 = vrot.slane %v1769, %v1778
        %v1781 = vunpack.c.l.s4 1966171168
        %v1782 = vunpack.c.0.s8 %v1781
        %v1783 = vlaneseq
        %v1784 = vshrl.u32 %v1783, 7
        %v1785 = vsub.s32 %v1782, %v1784
        %v1786 = vrot.slane %v1770, %v1785
        %v1788 = vunpack.c.l.s4 1966171168
        %v1789 = vunpack.c.0.s8 %v1788
        %v1790 = vlaneseq
        %v1791 = vshrl.u32 %v1790, 7
        %v1792 = vsub.s32 %v1789, %v1791
        %v1793 = vrot.slane %v1771, %v1792
        %v1795 = vunpack.c.l.s4 1966171168
        %v1796 = vunpack.c.0.s8 %v1795
        %v1797 = vlaneseq
        %v1798 = vshrl.u32 %v1797, 7
        %v1799 = vsub.s32 %v1796, %v1798
        %v1800 = vrot.slane %v1772, %v1799
        %v1801 = vcombine.low %v1779, %v1786
        %v1802 = vcombine.low %v1793, %v1800
        %v1804 = vunpack.c.l.s4 1966171168
        %v1805 = vunpack.c.0.s8 %v1804
        %v1806 = vlaneseq
        %v1807 = vshrl.u32 %v1806, 7
        %v1808 = vsub.s32 %v1805, %v1807
        %v1809 = vrot.slane %v1801, %v1808
        %v1811 = vunpack.c.l.s4 1966171168
        %v1812 = vunpack.c.0.s8 %v1811
        %v1813 = vlaneseq
        %v1814 = vshrl.u32 %v1813, 7
        %v1815 = vsub.s32 %v1812, %v1814
        %v1816 = vrot.slane %v1802, %v1815
        %v1817 = vcombine.low %v1809, %v1816
        %v1818 = vcombine.low %v712, %v716
        %v1819 = vcombine.low %v720, %v724
        %v1820 = vcombine.low %v728, %v732
        %v1821 = vcombine.low %v736, %v740
        %v1823 = vunpack.c.l.s4 1966171168
        %v1824 = vunpack.c.0.s8 %v1823
        %v1825 = vlaneseq
        %v1826 = vshrl.u32 %v1825, 7
        %v1827 = vsub.s32 %v1824, %v1826
        %v1828 = vrot.slane %v1818, %v1827
        %v1830 = vunpack.c.l.s4 1966171168
        %v1831 = vunpack.c.0.s8 %v1830
        %v1832 = vlaneseq
        %v1833 = vshrl.u32 %v1832, 7
        %v1834 = vsub.s32 %v1831, %v1833
        %v1835 = vrot.slane %v1819, %v1834
        %v1837 = vunpack.c.l.s4 1966171168
        %v1838 = vunpack.c.0.s8 %v1837
        %v1839 = vlaneseq
        %v1840 = vshrl.u32 %v1839, 7
        %v1841 = vsub.s32 %v1838, %v1840
        %v1842 = vrot.slane %v1820, %v1841
        %v1844 = vunpack.c.l.s4 1966171168
        %v1845 = vunpack.c.0.s8 %v1844
        %v1846 = vlaneseq
        %v1847 = vshrl.u32 %v1846, 7
        %v1848 = vsub.s32 %v1845, %v1847
        %v1849 = vrot.slane %v1821, %v1848
        %v1850 = vcombine.low %v1828, %v1835
        %v1851 = vcombine.low %v1842, %v1849
        %v1853 = vunpack.c.l.s4 1966171168
        %v1854 = vunpack.c.0.s8 %v1853
        %v1855 = vlaneseq
        %v1856 = vshrl.u32 %v1855, 7
        %v1857 = vsub.s32 %v1854, %v1856
        %v1858 = vrot.slane %v1850, %v1857
        %v1860 = vunpack.c.l.s4 1966171168
        %v1861 = vunpack.c.0.s8 %v1860
        %v1862 = vlaneseq
        %v1863 = vshrl.u32 %v1862, 7
        %v1864 = vsub.s32 %v1861, %v1863
        %v1865 = vrot.slane %v1851, %v1864
        %v1866 = vcombine.low %v1858, %v1865
        %v1867 = vcombine.low %v744, %v748
        %v1868 = vcombine.low %v752, %v756
        %v1869 = vcombine.low %v760, %v764
        %v1870 = vcombine.low %v768, %v772
        %v1872 = vunpack.c.l.s4 1966171168
        %v1873 = vunpack.c.0.s8 %v1872
        %v1874 = vlaneseq
        %v1875 = vshrl.u32 %v1874, 7
        %v1876 = vsub.s32 %v1873, %v1875
        %v1877 = vrot.slane %v1867, %v1876
        %v1879 = vunpack.c.l.s4 1966171168
        %v1880 = vunpack.c.0.s8 %v1879
        %v1881 = vlaneseq
        %v1882 = vshrl.u32 %v1881, 7
        %v1883 = vsub.s32 %v1880, %v1882
        %v1884 = vrot.slane %v1868, %v1883
        %v1886 = vunpack.c.l.s4 1966171168
        %v1887 = vunpack.c.0.s8 %v1886
        %v1888 = vlaneseq
        %v1889 = vshrl.u32 %v1888, 7
        %v1890 = vsub.s32 %v1887, %v1889
        %v1891 = vrot.slane %v1869, %v1890
        %v1893 = vunpack.c.l.s4 1966171168
        %v1894 = vunpack.c.0.s8 %v1893
        %v1895 = vlaneseq
        %v1896 = vshrl.u32 %v1895, 7
        %v1897 = vsub.s32 %v1894, %v1896
        %v1898 = vrot.slane %v1870, %v1897
        %v1899 = vcombine.low %v1877, %v1884
        %v1900 = vcombine.low %v1891, %v1898
        %v1902 = vunpack.c.l.s4 1966171168
        %v1903 = vunpack.c.0.s8 %v1902
        %v1904 = vlaneseq
        %v1905 = vshrl.u32 %v1904, 7
        %v1906 = vsub.s32 %v1903, %v1905
        %v1907 = vrot.slane %v1899, %v1906
        %v1909 = vunpack.c.l.s4 1966171168
        %v1910 = vunpack.c.0.s8 %v1909
        %v1911 = vlaneseq
        %v1912 = vshrl.u32 %v1911, 7
        %v1913 = vsub.s32 %v1910, %v1912
        %v1914 = vrot.slane %v1900, %v1913
        %v1915 = vcombine.low %v1907, %v1914
        %v1916 = vcombine.low %v776, %v780
        %v1917 = vcombine.low %v784, %v788
        %v1918 = vcombine.low %v792, %v796
        %v1919 = vcombine.low %v800, %v804
        %v1921 = vunpack.c.l.s4 1966171168
        %v1922 = vunpack.c.0.s8 %v1921
        %v1923 = vlaneseq
        %v1924 = vshrl.u32 %v1923, 7
        %v1925 = vsub.s32 %v1922, %v1924
        %v1926 = vrot.slane %v1916, %v1925
        %v1928 = vunpack.c.l.s4 1966171168
        %v1929 = vunpack.c.0.s8 %v1928
        %v1930 = vlaneseq
        %v1931 = vshrl.u32 %v1930, 7
        %v1932 = vsub.s32 %v1929, %v1931
        %v1933 = vrot.slane %v1917, %v1932
        %v1935 = vunpack.c.l.s4 1966171168
        %v1936 = vunpack.c.0.s8 %v1935
        %v1937 = vlaneseq
        %v1938 = vshrl.u32 %v1937, 7
        %v1939 = vsub.s32 %v1936, %v1938
        %v1940 = vrot.slane %v1918, %v1939
        %v1942 = vunpack.c.l.s4 1966171168
        %v1943 = vunpack.c.0.s8 %v1942
        %v1944 = vlaneseq
        %v1945 = vshrl.u32 %v1944, 7
        %v1946 = vsub.s32 %v1943, %v1945
        %v1947 = vrot.slane %v1919, %v1946
        %v1948 = vcombine.low %v1926, %v1933
        %v1949 = vcombine.low %v1940, %v1947
        %v1951 = vunpack.c.l.s4 1966171168
        %v1952 = vunpack.c.0.s8 %v1951
        %v1953 = vlaneseq
        %v1954 = vshrl.u32 %v1953, 7
        %v1955 = vsub.s32 %v1952, %v1954
        %v1956 = vrot.slane %v1948, %v1955
        %v1958 = vunpack.c.l.s4 1966171168
        %v1959 = vunpack.c.0.s8 %v1958
        %v1960 = vlaneseq
        %v1961 = vshrl.u32 %v1960, 7
        %v1962 = vsub.s32 %v1959, %v1961
        %v1963 = vrot.slane %v1949, %v1962
        %v1964 = vcombine.low %v1956, %v1963
        %v1965 = vcombine.low %v808, %v812
        %v1966 = vcombine.low %v816, %v820
        %v1967 = vcombine.low %v824, %v828
        %v1968 = vcombine.low %v832, %v836
        %v1970 = vunpack.c.l.s4 1966171168
        %v1971 = vunpack.c.0.s8 %v1970
        %v1972 = vlaneseq
        %v1973 = vshrl.u32 %v1972, 7
        %v1974 = vsub.s32 %v1971, %v1973
        %v1975 = vrot.slane %v1965, %v1974
        %v1977 = vunpack.c.l.s4 1966171168
        %v1978 = vunpack.c.0.s8 %v1977
        %v1979 = vlaneseq
        %v1980 = vshrl.u32 %v1979, 7
        %v1981 = vsub.s32 %v1978, %v1980
        %v1982 = vrot.slane %v1966, %v1981
        %v1984 = vunpack.c.l.s4 1966171168
        %v1985 = vunpack.c.0.s8 %v1984
        %v1986 = vlaneseq
        %v1987 = vshrl.u32 %v1986, 7
        %v1988 = vsub.s32 %v1985, %v1987
        %v1989 = vrot.slane %v1967, %v1988
        %v1991 = vunpack.c.l.s4 1966171168
        %v1992 = vunpack.c.0.s8 %v1991
        %v1993 = vlaneseq
        %v1994 = vshrl.u32 %v1993, 7
        %v1995 = vsub.s32 %v1992, %v1994
        %v1996 = vrot.slane %v1968, %v1995
        %v1997 = vcombine.low %v1975, %v1982
        %v1998 = vcombine.low %v1989, %v1996
        %v2000 = vunpack.c.l.s4 1966171168
        %v2001 = vunpack.c.0.s8 %v2000
        %v2002 = vlaneseq
        %v2003 = vshrl.u32 %v2002, 7
        %v2004 = vsub.s32 %v2001, %v2003
        %v2005 = vrot.slane %v1997, %v2004
        %v2007 = vunpack.c.l.s4 1966171168
        %v2008 = vunpack.c.0.s8 %v2007
        %v2009 = vlaneseq
        %v2010 = vshrl.u32 %v2009, 7
        %v2011 = vsub.s32 %v2008, %v2010
        %v2012 = vrot.slane %v1998, %v2011
        %v2013 = vcombine.low %v2005, %v2012
        %v2014 = vcombine.low %v840, %v844
        %v2015 = vcombine.low %v848, %v852
        %v2016 = vcombine.low %v856, %v860
        %v2017 = vcombine.low %v864, %v868
        %v2019 = vunpack.c.l.s4 1966171168
        %v2020 = vunpack.c.0.s8 %v2019
        %v2021 = vlaneseq
        %v2022 = vshrl.u32 %v2021, 7
        %v2023 = vsub.s32 %v2020, %v2022
        %v2024 = vrot.slane %v2014, %v2023
        %v2026 = vunpack.c.l.s4 1966171168
        %v2027 = vunpack.c.0.s8 %v2026
        %v2028 = vlaneseq
        %v2029 = vshrl.u32 %v2028, 7
        %v2030 = vsub.s32 %v2027, %v2029
        %v2031 = vrot.slane %v2015, %v2030
        %v2033 = vunpack.c.l.s4 1966171168
        %v2034 = vunpack.c.0.s8 %v2033
        %v2035 = vlaneseq
        %v2036 = vshrl.u32 %v2035, 7
        %v2037 = vsub.s32 %v2034, %v2036
        %v2038 = vrot.slane %v2016, %v2037
        %v2040 = vunpack.c.l.s4 1966171168
        %v2041 = vunpack.c.0.s8 %v2040
        %v2042 = vlaneseq
        %v2043 = vshrl.u32 %v2042, 7
        %v2044 = vsub.s32 %v2041, %v2043
        %v2045 = vrot.slane %v2017, %v2044
        %v2046 = vcombine.low %v2024, %v2031
        %v2047 = vcombine.low %v2038, %v2045
        %v2049 = vunpack.c.l.s4 1966171168
        %v2050 = vunpack.c.0.s8 %v2049
        %v2051 = vlaneseq
        %v2052 = vshrl.u32 %v2051, 7
        %v2053 = vsub.s32 %v2050, %v2052
        %v2054 = vrot.slane %v2046, %v2053
        %v2056 = vunpack.c.l.s4 1966171168
        %v2057 = vunpack.c.0.s8 %v2056
        %v2058 = vlaneseq
        %v2059 = vshrl.u32 %v2058, 7
        %v2060 = vsub.s32 %v2057, %v2059
        %v2061 = vrot.slane %v2047, %v2060
        %v2062 = vcombine.low %v2054, %v2061
        %v2063 = vcombine.low %v872, %v876
        %v2064 = vcombine.low %v880, %v884
        %v2065 = vcombine.low %v888, %v892
        %v2066 = vcombine.low %v896, %v900
        %v2068 = vunpack.c.l.s4 1966171168
        %v2069 = vunpack.c.0.s8 %v2068
        %v2070 = vlaneseq
        %v2071 = vshrl.u32 %v2070, 7
        %v2072 = vsub.s32 %v2069, %v2071
        %v2073 = vrot.slane %v2063, %v2072
        %v2075 = vunpack.c.l.s4 1966171168
        %v2076 = vunpack.c.0.s8 %v2075
        %v2077 = vlaneseq
        %v2078 = vshrl.u32 %v2077, 7
        %v2079 = vsub.s32 %v2076, %v2078
        %v2080 = vrot.slane %v2064, %v2079
        %v2082 = vunpack.c.l.s4 1966171168
        %v2083 = vunpack.c.0.s8 %v2082
        %v2084 = vlaneseq
        %v2085 = vshrl.u32 %v2084, 7
        %v2086 = vsub.s32 %v2083, %v2085
        %v2087 = vrot.slane %v2065, %v2086
        %v2089 = vunpack.c.l.s4 1966171168
        %v2090 = vunpack.c.0.s8 %v2089
        %v2091 = vlaneseq
        %v2092 = vshrl.u32 %v2091, 7
        %v2093 = vsub.s32 %v2090, %v2092
        %v2094 = vrot.slane %v2066, %v2093
        %v2095 = vcombine.low %v2073, %v2080
        %v2096 = vcombine.low %v2087, %v2094
        %v2098 = vunpack.c.l.s4 1966171168
        %v2099 = vunpack.c.0.s8 %v2098
        %v2100 = vlaneseq
        %v2101 = vshrl.u32 %v2100, 7
        %v2102 = vsub.s32 %v2099, %v2101
        %v2103 = vrot.slane %v2095, %v2102
        %v2105 = vunpack.c.l.s4 1966171168
        %v2106 = vunpack.c.0.s8 %v2105
        %v2107 = vlaneseq
        %v2108 = vshrl.u32 %v2107, 7
        %v2109 = vsub.s32 %v2106, %v2108
        %v2110 = vrot.slane %v2096, %v2109
        %v2111 = vcombine.low %v2103, %v2110
        %v2112 = vcombine.low %v904, %v908
        %v2113 = vcombine.low %v912, %v916
        %v2114 = vcombine.low %v920, %v924
        %v2115 = vcombine.low %v928, %v932
        %v2117 = vunpack.c.l.s4 1966171168
        %v2118 = vunpack.c.0.s8 %v2117
        %v2119 = vlaneseq
        %v2120 = vshrl.u32 %v2119, 7
        %v2121 = vsub.s32 %v2118, %v2120
        %v2122 = vrot.slane %v2112, %v2121
        %v2124 = vunpack.c.l.s4 1966171168
        %v2125 = vunpack.c.0.s8 %v2124
        %v2126 = vlaneseq
        %v2127 = vshrl.u32 %v2126, 7
        %v2128 = vsub.s32 %v2125, %v2127
        %v2129 = vrot.slane %v2113, %v2128
        %v2131 = vunpack.c.l.s4 1966171168
        %v2132 = vunpack.c.0.s8 %v2131
        %v2133 = vlaneseq
        %v2134 = vshrl.u32 %v2133, 7
        %v2135 = vsub.s32 %v2132, %v2134
        %v2136 = vrot.slane %v2114, %v2135
        %v2138 = vunpack.c.l.s4 1966171168
        %v2139 = vunpack.c.0.s8 %v2138
        %v2140 = vlaneseq
        %v2141 = vshrl.u32 %v2140, 7
        %v2142 = vsub.s32 %v2139, %v2141
        %v2143 = vrot.slane %v2115, %v2142
        %v2144 = vcombine.low %v2122, %v2129
        %v2145 = vcombine.low %v2136, %v2143
        %v2147 = vunpack.c.l.s4 1966171168
        %v2148 = vunpack.c.0.s8 %v2147
        %v2149 = vlaneseq
        %v2150 = vshrl.u32 %v2149, 7
        %v2151 = vsub.s32 %v2148, %v2150
        %v2152 = vrot.slane %v2144, %v2151
        %v2154 = vunpack.c.l.s4 1966171168
        %v2155 = vunpack.c.0.s8 %v2154
        %v2156 = vlaneseq
        %v2157 = vshrl.u32 %v2156, 7
        %v2158 = vsub.s32 %v2155, %v2157
        %v2159 = vrot.slane %v2145, %v2158
        %v2160 = vcombine.low %v2152, %v2159
        %v2161 = vcombine.low %v936, %v940
        %v2162 = vcombine.low %v944, %v948
        %v2163 = vcombine.low %v952, %v956
        %v2164 = vcombine.low %v960, %v964
        %v2166 = vunpack.c.l.s4 1966171168
        %v2167 = vunpack.c.0.s8 %v2166
        %v2168 = vlaneseq
        %v2169 = vshrl.u32 %v2168, 7
        %v2170 = vsub.s32 %v2167, %v2169
        %v2171 = vrot.slane %v2161, %v2170
        %v2173 = vunpack.c.l.s4 1966171168
        %v2174 = vunpack.c.0.s8 %v2173
        %v2175 = vlaneseq
        %v2176 = vshrl.u32 %v2175, 7
        %v2177 = vsub.s32 %v2174, %v2176
        %v2178 = vrot.slane %v2162, %v2177
        %v2180 = vunpack.c.l.s4 1966171168
        %v2181 = vunpack.c.0.s8 %v2180
        %v2182 = vlaneseq
        %v2183 = vshrl.u32 %v2182, 7
        %v2184 = vsub.s32 %v2181, %v2183
        %v2185 = vrot.slane %v2163, %v2184
        %v2187 = vunpack.c.l.s4 1966171168
        %v2188 = vunpack.c.0.s8 %v2187
        %v2189 = vlaneseq
        %v2190 = vshrl.u32 %v2189, 7
        %v2191 = vsub.s32 %v2188, %v2190
        %v2192 = vrot.slane %v2164, %v2191
        %v2193 = vcombine.low %v2171, %v2178
        %v2194 = vcombine.low %v2185, %v2192
        %v2196 = vunpack.c.l.s4 1966171168
        %v2197 = vunpack.c.0.s8 %v2196
        %v2198 = vlaneseq
        %v2199 = vshrl.u32 %v2198, 7
        %v2200 = vsub.s32 %v2197, %v2199
        %v2201 = vrot.slane %v2193, %v2200
        %v2203 = vunpack.c.l.s4 1966171168
        %v2204 = vunpack.c.0.s8 %v2203
        %v2205 = vlaneseq
        %v2206 = vshrl.u32 %v2205, 7
        %v2207 = vsub.s32 %v2204, %v2206
        %v2208 = vrot.slane %v2194, %v2207
        %v2209 = vcombine.low %v2201, %v2208
        %v2210 = vcombine.low %v968, %v972
        %v2211 = vcombine.low %v976, %v980
        %v2212 = vcombine.low %v984, %v988
        %v2213 = vcombine.low %v992, %v996
        %v2215 = vunpack.c.l.s4 1966171168
        %v2216 = vunpack.c.0.s8 %v2215
        %v2217 = vlaneseq
        %v2218 = vshrl.u32 %v2217, 7
        %v2219 = vsub.s32 %v2216, %v2218
        %v2220 = vrot.slane %v2210, %v2219
        %v2222 = vunpack.c.l.s4 1966171168
        %v2223 = vunpack.c.0.s8 %v2222
        %v2224 = vlaneseq
        %v2225 = vshrl.u32 %v2224, 7
        %v2226 = vsub.s32 %v2223, %v2225
        %v2227 = vrot.slane %v2211, %v2226
        %v2229 = vunpack.c.l.s4 1966171168
        %v2230 = vunpack.c.0.s8 %v2229
        %v2231 = vlaneseq
        %v2232 = vshrl.u32 %v2231, 7
        %v2233 = vsub.s32 %v2230, %v2232
        %v2234 = vrot.slane %v2212, %v2233
        %v2236 = vunpack.c.l.s4 1966171168
        %v2237 = vunpack.c.0.s8 %v2236
        %v2238 = vlaneseq
        %v2239 = vshrl.u32 %v2238, 7
        %v2240 = vsub.s32 %v2237, %v2239
        %v2241 = vrot.slane %v2213, %v2240
        %v2242 = vcombine.low %v2220, %v2227
        %v2243 = vcombine.low %v2234, %v2241
        %v2245 = vunpack.c.l.s4 1966171168
        %v2246 = vunpack.c.0.s8 %v2245
        %v2247 = vlaneseq
        %v2248 = vshrl.u32 %v2247, 7
        %v2249 = vsub.s32 %v2246, %v2248
        %v2250 = vrot.slane %v2242, %v2249
        %v2252 = vunpack.c.l.s4 1966171168
        %v2253 = vunpack.c.0.s8 %v2252
        %v2254 = vlaneseq
        %v2255 = vshrl.u32 %v2254, 7
        %v2256 = vsub.s32 %v2253, %v2255
        %v2257 = vrot.slane %v2243, %v2256
        %v2258 = vcombine.low %v2250, %v2257
        %v2259 = vcombine.low %v1000, %v1004
        %v2260 = vcombine.low %v1008, %v1012
        %v2261 = vcombine.low %v1016, %v1020
        %v2262 = vcombine.low %v1024, %v1028
        %v2264 = vunpack.c.l.s4 1966171168
        %v2265 = vunpack.c.0.s8 %v2264
        %v2266 = vlaneseq
        %v2267 = vshrl.u32 %v2266, 7
        %v2268 = vsub.s32 %v2265, %v2267
        %v2269 = vrot.slane %v2259, %v2268
        %v2271 = vunpack.c.l.s4 1966171168
        %v2272 = vunpack.c.0.s8 %v2271
        %v2273 = vlaneseq
        %v2274 = vshrl.u32 %v2273, 7
        %v2275 = vsub.s32 %v2272, %v2274
        %v2276 = vrot.slane %v2260, %v2275
        %v2278 = vunpack.c.l.s4 1966171168
        %v2279 = vunpack.c.0.s8 %v2278
        %v2280 = vlaneseq
        %v2281 = vshrl.u32 %v2280, 7
        %v2282 = vsub.s32 %v2279, %v2281
        %v2283 = vrot.slane %v2261, %v2282
        %v2285 = vunpack.c.l.s4 1966171168
        %v2286 = vunpack.c.0.s8 %v2285
        %v2287 = vlaneseq
        %v2288 = vshrl.u32 %v2287, 7
        %v2289 = vsub.s32 %v2286, %v2288
        %v2290 = vrot.slane %v2262, %v2289
        %v2291 = vcombine.low %v2269, %v2276
        %v2292 = vcombine.low %v2283, %v2290
        %v2294 = vunpack.c.l.s4 1966171168
        %v2295 = vunpack.c.0.s8 %v2294
        %v2296 = vlaneseq
        %v2297 = vshrl.u32 %v2296, 7
        %v2298 = vsub.s32 %v2295, %v2297
        %v2299 = vrot.slane %v2291, %v2298
        %v2301 = vunpack.c.l.s4 1966171168
        %v2302 = vunpack.c.0.s8 %v2301
        %v2303 = vlaneseq
        %v2304 = vshrl.u32 %v2303, 7
        %v2305 = vsub.s32 %v2302, %v2304
        %v2306 = vrot.slane %v2292, %v2305
        %v2307 = vcombine.low %v2299, %v2306
        %v2308 = vcombine.low %v1032, %v1036
        %v2309 = vcombine.low %v1040, %v1044
        %v2310 = vcombine.low %v1048, %v1052
        %v2311 = vcombine.low %v1056, %v1060
        %v2313 = vunpack.c.l.s4 1966171168
        %v2314 = vunpack.c.0.s8 %v2313
        %v2315 = vlaneseq
        %v2316 = vshrl.u32 %v2315, 7
        %v2317 = vsub.s32 %v2314, %v2316
        %v2318 = vrot.slane %v2308, %v2317
        %v2320 = vunpack.c.l.s4 1966171168
        %v2321 = vunpack.c.0.s8 %v2320
        %v2322 = vlaneseq
        %v2323 = vshrl.u32 %v2322, 7
        %v2324 = vsub.s32 %v2321, %v2323
        %v2325 = vrot.slane %v2309, %v2324
        %v2327 = vunpack.c.l.s4 1966171168
        %v2328 = vunpack.c.0.s8 %v2327
        %v2329 = vlaneseq
        %v2330 = vshrl.u32 %v2329, 7
        %v2331 = vsub.s32 %v2328, %v2330
        %v2332 = vrot.slane %v2310, %v2331
        %v2334 = vunpack.c.l.s4 1966171168
        %v2335 = vunpack.c.0.s8 %v2334
        %v2336 = vlaneseq
        %v2337 = vshrl.u32 %v2336, 7
        %v2338 = vsub.s32 %v2335, %v2337
        %v2339 = vrot.slane %v2311, %v2338
        %v2340 = vcombine.low %v2318, %v2325
        %v2341 = vcombine.low %v2332, %v2339
        %v2343 = vunpack.c.l.s4 1966171168
        %v2344 = vunpack.c.0.s8 %v2343
        %v2345 = vlaneseq
        %v2346 = vshrl.u32 %v2345, 7
        %v2347 = vsub.s32 %v2344, %v2346
        %v2348 = vrot.slane %v2340, %v2347
        %v2350 = vunpack.c.l.s4 1966171168
        %v2351 = vunpack.c.0.s8 %v2350
        %v2352 = vlaneseq
        %v2353 = vshrl.u32 %v2352, 7
        %v2354 = vsub.s32 %v2351, %v2353
        %v2355 = vrot.slane %v2341, %v2354
        %v2356 = vcombine.low %v2348, %v2355
        %v2357 = vcombine.low %v1064, %v1068
        %v2358 = vcombine.low %v1072, %v1076
        %v2359 = vcombine.low %v1080, %v1084
        %v2360 = vcombine.low %v1088, %v1092
        %v2362 = vunpack.c.l.s4 1966171168
        %v2363 = vunpack.c.0.s8 %v2362
        %v2364 = vlaneseq
        %v2365 = vshrl.u32 %v2364, 7
        %v2366 = vsub.s32 %v2363, %v2365
        %v2367 = vrot.slane %v2357, %v2366
        %v2369 = vunpack.c.l.s4 1966171168
        %v2370 = vunpack.c.0.s8 %v2369
        %v2371 = vlaneseq
        %v2372 = vshrl.u32 %v2371, 7
        %v2373 = vsub.s32 %v2370, %v2372
        %v2374 = vrot.slane %v2358, %v2373
        %v2376 = vunpack.c.l.s4 1966171168
        %v2377 = vunpack.c.0.s8 %v2376
        %v2378 = vlaneseq
        %v2379 = vshrl.u32 %v2378, 7
        %v2380 = vsub.s32 %v2377, %v2379
        %v2381 = vrot.slane %v2359, %v2380
        %v2383 = vunpack.c.l.s4 1966171168
        %v2384 = vunpack.c.0.s8 %v2383
        %v2385 = vlaneseq
        %v2386 = vshrl.u32 %v2385, 7
        %v2387 = vsub.s32 %v2384, %v2386
        %v2388 = vrot.slane %v2360, %v2387
        %v2389 = vcombine.low %v2367, %v2374
        %v2390 = vcombine.low %v2381, %v2388
        %v2392 = vunpack.c.l.s4 1966171168
        %v2393 = vunpack.c.0.s8 %v2392
        %v2394 = vlaneseq
        %v2395 = vshrl.u32 %v2394, 7
        %v2396 = vsub.s32 %v2393, %v2395
        %v2397 = vrot.slane %v2389, %v2396
        %v2399 = vunpack.c.l.s4 1966171168
        %v2400 = vunpack.c.0.s8 %v2399
        %v2401 = vlaneseq
        %v2402 = vshrl.u32 %v2401, 7
        %v2403 = vsub.s32 %v2400, %v2402
        %v2404 = vrot.slane %v2390, %v2403
        %v2405 = vcombine.low %v2397, %v2404
        %v2406 = vcombine.low %v1096, %v1100
        %v2407 = vcombine.low %v1104, %v1108
        %v2408 = vcombine.low %v1112, %v1116
        %v2409 = vcombine.low %v1120, %v1124
        %v2411 = vunpack.c.l.s4 1966171168
        %v2412 = vunpack.c.0.s8 %v2411
        %v2413 = vlaneseq
        %v2414 = vshrl.u32 %v2413, 7
        %v2415 = vsub.s32 %v2412, %v2414
        %v2416 = vrot.slane %v2406, %v2415
        %v2418 = vunpack.c.l.s4 1966171168
        %v2419 = vunpack.c.0.s8 %v2418
        %v2420 = vlaneseq
        %v2421 = vshrl.u32 %v2420, 7
        %v2422 = vsub.s32 %v2419, %v2421
        %v2423 = vrot.slane %v2407, %v2422
        %v2425 = vunpack.c.l.s4 1966171168
        %v2426 = vunpack.c.0.s8 %v2425
        %v2427 = vlaneseq
        %v2428 = vshrl.u32 %v2427, 7
        %v2429 = vsub.s32 %v2426, %v2428
        %v2430 = vrot.slane %v2408, %v2429
        %v2432 = vunpack.c.l.s4 1966171168
        %v2433 = vunpack.c.0.s8 %v2432
        %v2434 = vlaneseq
        %v2435 = vshrl.u32 %v2434, 7
        %v2436 = vsub.s32 %v2433, %v2435
        %v2437 = vrot.slane %v2409, %v2436
        %v2438 = vcombine.low %v2416, %v2423
        %v2439 = vcombine.low %v2430, %v2437
        %v2441 = vunpack.c.l.s4 1966171168
        %v2442 = vunpack.c.0.s8 %v2441
        %v2443 = vlaneseq
        %v2444 = vshrl.u32 %v2443, 7
        %v2445 = vsub.s32 %v2442, %v2444
        %v2446 = vrot.slane %v2438, %v2445
        %v2448 = vunpack.c.l.s4 1966171168
        %v2449 = vunpack.c.0.s8 %v2448
        %v2450 = vlaneseq
        %v2451 = vshrl.u32 %v2450, 7
        %v2452 = vsub.s32 %v2449, %v2451
        %v2453 = vrot.slane %v2439, %v2452
        %v2454 = vcombine.low %v2446, %v2453
        %v2455 = vcombine.low %v1128, %v1132
        %v2456 = vcombine.low %v1136, %v1140
        %v2457 = vcombine.low %v1144, %v1148
        %v2458 = vcombine.low %v1152, %v1156
        %v2460 = vunpack.c.l.s4 1966171168
        %v2461 = vunpack.c.0.s8 %v2460
        %v2462 = vlaneseq
        %v2463 = vshrl.u32 %v2462, 7
        %v2464 = vsub.s32 %v2461, %v2463
        %v2465 = vrot.slane %v2455, %v2464
        %v2467 = vunpack.c.l.s4 1966171168
        %v2468 = vunpack.c.0.s8 %v2467
        %v2469 = vlaneseq
        %v2470 = vshrl.u32 %v2469, 7
        %v2471 = vsub.s32 %v2468, %v2470
        %v2472 = vrot.slane %v2456, %v2471
        %v2474 = vunpack.c.l.s4 1966171168
        %v2475 = vunpack.c.0.s8 %v2474
        %v2476 = vlaneseq
        %v2477 = vshrl.u32 %v2476, 7
        %v2478 = vsub.s32 %v2475, %v2477
        %v2479 = vrot.slane %v2457, %v2478
        %v2481 = vunpack.c.l.s4 1966171168
        %v2482 = vunpack.c.0.s8 %v2481
        %v2483 = vlaneseq
        %v2484 = vshrl.u32 %v2483, 7
        %v2485 = vsub.s32 %v2482, %v2484
        %v2486 = vrot.slane %v2458, %v2485
        %v2487 = vcombine.low %v2465, %v2472
        %v2488 = vcombine.low %v2479, %v2486
        %v2490 = vunpack.c.l.s4 1966171168
        %v2491 = vunpack.c.0.s8 %v2490
        %v2492 = vlaneseq
        %v2493 = vshrl.u32 %v2492, 7
        %v2494 = vsub.s32 %v2491, %v2493
        %v2495 = vrot.slane %v2487, %v2494
        %v2497 = vunpack.c.l.s4 1966171168
        %v2498 = vunpack.c.0.s8 %v2497
        %v2499 = vlaneseq
        %v2500 = vshrl.u32 %v2499, 7
        %v2501 = vsub.s32 %v2498, %v2500
        %v2502 = vrot.slane %v2488, %v2501
        %v2503 = vcombine.low %v2495, %v2502
        %v2504 = vcombine.low %v1160, %v1164
        %v2505 = vcombine.low %v1168, %v1172
        %v2506 = vcombine.low %v1176, %v1180
        %v2507 = vcombine.low %v1184, %v1188
        %v2509 = vunpack.c.l.s4 1966171168
        %v2510 = vunpack.c.0.s8 %v2509
        %v2511 = vlaneseq
        %v2512 = vshrl.u32 %v2511, 7
        %v2513 = vsub.s32 %v2510, %v2512
        %v2514 = vrot.slane %v2504, %v2513
        %v2516 = vunpack.c.l.s4 1966171168
        %v2517 = vunpack.c.0.s8 %v2516
        %v2518 = vlaneseq
        %v2519 = vshrl.u32 %v2518, 7
        %v2520 = vsub.s32 %v2517, %v2519
        %v2521 = vrot.slane %v2505, %v2520
        %v2523 = vunpack.c.l.s4 1966171168
        %v2524 = vunpack.c.0.s8 %v2523
        %v2525 = vlaneseq
        %v2526 = vshrl.u32 %v2525, 7
        %v2527 = vsub.s32 %v2524, %v2526
        %v2528 = vrot.slane %v2506, %v2527
        %v2530 = vunpack.c.l.s4 1966171168
        %v2531 = vunpack.c.0.s8 %v2530
        %v2532 = vlaneseq
        %v2533 = vshrl.u32 %v2532, 7
        %v2534 = vsub.s32 %v2531, %v2533
        %v2535 = vrot.slane %v2507, %v2534
        %v2536 = vcombine.low %v2514, %v2521
        %v2537 = vcombine.low %v2528, %v2535
        %v2539 = vunpack.c.l.s4 1966171168
        %v2540 = vunpack.c.0.s8 %v2539
        %v2541 = vlaneseq
        %v2542 = vshrl.u32 %v2541, 7
        %v2543 = vsub.s32 %v2540, %v2542
        %v2544 = vrot.slane %v2536, %v2543
        %v2546 = vunpack.c.l.s4 1966171168
        %v2547 = vunpack.c.0.s8 %v2546
        %v2548 = vlaneseq
        %v2549 = vshrl.u32 %v2548, 7
        %v2550 = vsub.s32 %v2547, %v2549
        %v2551 = vrot.slane %v2537, %v2550
        %v2552 = vcombine.low %v2544, %v2551
        %v2553 = vcombine.low %v1192, %v1196
        %v2554 = vcombine.low %v1200, %v1204
        %v2555 = vcombine.low %v1208, %v1212
        %v2556 = vcombine.low %v1216, %v1220
        %v2558 = vunpack.c.l.s4 1966171168
        %v2559 = vunpack.c.0.s8 %v2558
        %v2560 = vlaneseq
        %v2561 = vshrl.u32 %v2560, 7
        %v2562 = vsub.s32 %v2559, %v2561
        %v2563 = vrot.slane %v2553, %v2562
        %v2565 = vunpack.c.l.s4 1966171168
        %v2566 = vunpack.c.0.s8 %v2565
        %v2567 = vlaneseq
        %v2568 = vshrl.u32 %v2567, 7
        %v2569 = vsub.s32 %v2566, %v2568
        %v2570 = vrot.slane %v2554, %v2569
        %v2572 = vunpack.c.l.s4 1966171168
        %v2573 = vunpack.c.0.s8 %v2572
        %v2574 = vlaneseq
        %v2575 = vshrl.u32 %v2574, 7
        %v2576 = vsub.s32 %v2573, %v2575
        %v2577 = vrot.slane %v2555, %v2576
        %v2579 = vunpack.c.l.s4 1966171168
        %v2580 = vunpack.c.0.s8 %v2579
        %v2581 = vlaneseq
        %v2582 = vshrl.u32 %v2581, 7
        %v2583 = vsub.s32 %v2580, %v2582
        %v2584 = vrot.slane %v2556, %v2583
        %v2585 = vcombine.low %v2563, %v2570
        %v2586 = vcombine.low %v2577, %v2584
        %v2588 = vunpack.c.l.s4 1966171168
        %v2589 = vunpack.c.0.s8 %v2588
        %v2590 = vlaneseq
        %v2591 = vshrl.u32 %v2590, 7
        %v2592 = vsub.s32 %v2589, %v2591
        %v2593 = vrot.slane %v2585, %v2592
        %v2595 = vunpack.c.l.s4 1966171168
        %v2596 = vunpack.c.0.s8 %v2595
        %v2597 = vlaneseq
        %v2598 = vshrl.u32 %v2597, 7
        %v2599 = vsub.s32 %v2596, %v2598
        %v2600 = vrot.slane %v2586, %v2599
        %v2601 = vcombine.low %v2593, %v2600
        %v2602 = vcombine.low %v1224, %v1228
        %v2603 = vcombine.low %v1232, %v1236
        %v2604 = vcombine.low %v1240, %v1244
        %v2605 = vcombine.low %v1248, %v1252
        %v2607 = vunpack.c.l.s4 1966171168
        %v2608 = vunpack.c.0.s8 %v2607
        %v2609 = vlaneseq
        %v2610 = vshrl.u32 %v2609, 7
        %v2611 = vsub.s32 %v2608, %v2610
        %v2612 = vrot.slane %v2602, %v2611
        %v2614 = vunpack.c.l.s4 1966171168
        %v2615 = vunpack.c.0.s8 %v2614
        %v2616 = vlaneseq
        %v2617 = vshrl.u32 %v2616, 7
        %v2618 = vsub.s32 %v2615, %v2617
        %v2619 = vrot.slane %v2603, %v2618
        %v2621 = vunpack.c.l.s4 1966171168
        %v2622 = vunpack.c.0.s8 %v2621
        %v2623 = vlaneseq
        %v2624 = vshrl.u32 %v2623, 7
        %v2625 = vsub.s32 %v2622, %v2624
        %v2626 = vrot.slane %v2604, %v2625
        %v2628 = vunpack.c.l.s4 1966171168
        %v2629 = vunpack.c.0.s8 %v2628
        %v2630 = vlaneseq
        %v2631 = vshrl.u32 %v2630, 7
        %v2632 = vsub.s32 %v2629, %v2631
        %v2633 = vrot.slane %v2605, %v2632
        %v2634 = vcombine.low %v2612, %v2619
        %v2635 = vcombine.low %v2626, %v2633
        %v2637 = vunpack.c.l.s4 1966171168
        %v2638 = vunpack.c.0.s8 %v2637
        %v2639 = vlaneseq
        %v2640 = vshrl.u32 %v2639, 7
        %v2641 = vsub.s32 %v2638, %v2640
        %v2642 = vrot.slane %v2634, %v2641
        %v2644 = vunpack.c.l.s4 1966171168
        %v2645 = vunpack.c.0.s8 %v2644
        %v2646 = vlaneseq
        %v2647 = vshrl.u32 %v2646, 7
        %v2648 = vsub.s32 %v2645, %v2647
        %v2649 = vrot.slane %v2635, %v2648
        %v2650 = vcombine.low %v2642, %v2649
        %v2651 = vcombine.low %v1256, %v1260
        %v2652 = vcombine.low %v1264, %v1268
        %v2653 = vcombine.low %v1272, %v1276
        %v2654 = vcombine.low %v1280, %v1284
        %v2656 = vunpack.c.l.s4 1966171168
        %v2657 = vunpack.c.0.s8 %v2656
        %v2658 = vlaneseq
        %v2659 = vshrl.u32 %v2658, 7
        %v2660 = vsub.s32 %v2657, %v2659
        %v2661 = vrot.slane %v2651, %v2660
        %v2663 = vunpack.c.l.s4 1966171168
        %v2664 = vunpack.c.0.s8 %v2663
        %v2665 = vlaneseq
        %v2666 = vshrl.u32 %v2665, 7
        %v2667 = vsub.s32 %v2664, %v2666
        %v2668 = vrot.slane %v2652, %v2667
        %v2670 = vunpack.c.l.s4 1966171168
        %v2671 = vunpack.c.0.s8 %v2670
        %v2672 = vlaneseq
        %v2673 = vshrl.u32 %v2672, 7
        %v2674 = vsub.s32 %v2671, %v2673
        %v2675 = vrot.slane %v2653, %v2674
        %v2677 = vunpack.c.l.s4 1966171168
        %v2678 = vunpack.c.0.s8 %v2677
        %v2679 = vlaneseq
        %v2680 = vshrl.u32 %v2679, 7
        %v2681 = vsub.s32 %v2678, %v2680
        %v2682 = vrot.slane %v2654, %v2681
        %v2683 = vcombine.low %v2661, %v2668
        %v2684 = vcombine.low %v2675, %v2682
        %v2686 = vunpack.c.l.s4 1966171168
        %v2687 = vunpack.c.0.s8 %v2686
        %v2688 = vlaneseq
        %v2689 = vshrl.u32 %v2688, 7
        %v2690 = vsub.s32 %v2687, %v2689
        %v2691 = vrot.slane %v2683, %v2690
        %v2693 = vunpack.c.l.s4 1966171168
        %v2694 = vunpack.c.0.s8 %v2693
        %v2695 = vlaneseq
        %v2696 = vshrl.u32 %v2695, 7
        %v2697 = vsub.s32 %v2694, %v2696
        %v2698 = vrot.slane %v2684, %v2697
        %v2699 = vcombine.low %v2691, %v2698
        %v2700 = vcombine.low %v1288, %v1292
        %v2701 = vcombine.low %v1296, %v1300
        %v2702 = vcombine.low %v1304, %v1308
        %v2703 = vcombine.low %v1312, %v1316
        %v2705 = vunpack.c.l.s4 1966171168
        %v2706 = vunpack.c.0.s8 %v2705
        %v2707 = vlaneseq
        %v2708 = vshrl.u32 %v2707, 7
        %v2709 = vsub.s32 %v2706, %v2708
        %v2710 = vrot.slane %v2700, %v2709
        %v2712 = vunpack.c.l.s4 1966171168
        %v2713 = vunpack.c.0.s8 %v2712
        %v2714 = vlaneseq
        %v2715 = vshrl.u32 %v2714, 7
        %v2716 = vsub.s32 %v2713, %v2715
        %v2717 = vrot.slane %v2701, %v2716
        %v2719 = vunpack.c.l.s4 1966171168
        %v2720 = vunpack.c.0.s8 %v2719
        %v2721 = vlaneseq
        %v2722 = vshrl.u32 %v2721, 7
        %v2723 = vsub.s32 %v2720, %v2722
        %v2724 = vrot.slane %v2702, %v2723
        %v2726 = vunpack.c.l.s4 1966171168
        %v2727 = vunpack.c.0.s8 %v2726
        %v2728 = vlaneseq
        %v2729 = vshrl.u32 %v2728, 7
        %v2730 = vsub.s32 %v2727, %v2729
        %v2731 = vrot.slane %v2703, %v2730
        %v2732 = vcombine.low %v2710, %v2717
        %v2733 = vcombine.low %v2724, %v2731
        %v2735 = vunpack.c.l.s4 1966171168
        %v2736 = vunpack.c.0.s8 %v2735
        %v2737 = vlaneseq
        %v2738 = vshrl.u32 %v2737, 7
        %v2739 = vsub.s32 %v2736, %v2738
        %v2740 = vrot.slane %v2732, %v2739
        %v2742 = vunpack.c.l.s4 1966171168
        %v2743 = vunpack.c.0.s8 %v2742
        %v2744 = vlaneseq
        %v2745 = vshrl.u32 %v2744, 7
        %v2746 = vsub.s32 %v2743, %v2745
        %v2747 = vrot.slane %v2733, %v2746
        %v2748 = vcombine.low %v2740, %v2747
        %v2749 = vcombine.low %v1320, %v1324
        %v2750 = vcombine.low %v1328, %v1332
        %v2751 = vcombine.low %v1336, %v1340
        %v2752 = vcombine.low %v1344, %v1348
        %v2754 = vunpack.c.l.s4 1966171168
        %v2755 = vunpack.c.0.s8 %v2754
        %v2756 = vlaneseq
        %v2757 = vshrl.u32 %v2756, 7
        %v2758 = vsub.s32 %v2755, %v2757
        %v2759 = vrot.slane %v2749, %v2758
        %v2761 = vunpack.c.l.s4 1966171168
        %v2762 = vunpack.c.0.s8 %v2761
        %v2763 = vlaneseq
        %v2764 = vshrl.u32 %v2763, 7
        %v2765 = vsub.s32 %v2762, %v2764
        %v2766 = vrot.slane %v2750, %v2765
        %v2768 = vunpack.c.l.s4 1966171168
        %v2769 = vunpack.c.0.s8 %v2768
        %v2770 = vlaneseq
        %v2771 = vshrl.u32 %v2770, 7
        %v2772 = vsub.s32 %v2769, %v2771
        %v2773 = vrot.slane %v2751, %v2772
        %v2775 = vunpack.c.l.s4 1966171168
        %v2776 = vunpack.c.0.s8 %v2775
        %v2777 = vlaneseq
        %v2778 = vshrl.u32 %v2777, 7
        %v2779 = vsub.s32 %v2776, %v2778
        %v2780 = vrot.slane %v2752, %v2779
        %v2781 = vcombine.low %v2759, %v2766
        %v2782 = vcombine.low %v2773, %v2780
        %v2784 = vunpack.c.l.s4 1966171168
        %v2785 = vunpack.c.0.s8 %v2784
        %v2786 = vlaneseq
        %v2787 = vshrl.u32 %v2786, 7
        %v2788 = vsub.s32 %v2785, %v2787
        %v2789 = vrot.slane %v2781, %v2788
        %v2791 = vunpack.c.l.s4 1966171168
        %v2792 = vunpack.c.0.s8 %v2791
        %v2793 = vlaneseq
        %v2794 = vshrl.u32 %v2793, 7
        %v2795 = vsub.s32 %v2792, %v2794
        %v2796 = vrot.slane %v2782, %v2795
        %v2797 = vcombine.low %v2789, %v2796
        %v2798 = vcombine.low %v1352, %v1356
        %v2799 = vcombine.low %v1360, %v1364
        %v2800 = vcombine.low %v1368, %v1372
        %v2801 = vcombine.low %v1376, %v1380
        %v2803 = vunpack.c.l.s4 1966171168
        %v2804 = vunpack.c.0.s8 %v2803
        %v2805 = vlaneseq
        %v2806 = vshrl.u32 %v2805, 7
        %v2807 = vsub.s32 %v2804, %v2806
        %v2808 = vrot.slane %v2798, %v2807
        %v2810 = vunpack.c.l.s4 1966171168
        %v2811 = vunpack.c.0.s8 %v2810
        %v2812 = vlaneseq
        %v2813 = vshrl.u32 %v2812, 7
        %v2814 = vsub.s32 %v2811, %v2813
        %v2815 = vrot.slane %v2799, %v2814
        %v2817 = vunpack.c.l.s4 1966171168
        %v2818 = vunpack.c.0.s8 %v2817
        %v2819 = vlaneseq
        %v2820 = vshrl.u32 %v2819, 7
        %v2821 = vsub.s32 %v2818, %v2820
        %v2822 = vrot.slane %v2800, %v2821
        %v2824 = vunpack.c.l.s4 1966171168
        %v2825 = vunpack.c.0.s8 %v2824
        %v2826 = vlaneseq
        %v2827 = vshrl.u32 %v2826, 7
        %v2828 = vsub.s32 %v2825, %v2827
        %v2829 = vrot.slane %v2801, %v2828
        %v2830 = vcombine.low %v2808, %v2815
        %v2831 = vcombine.low %v2822, %v2829
        %v2833 = vunpack.c.l.s4 1966171168
        %v2834 = vunpack.c.0.s8 %v2833
        %v2835 = vlaneseq
        %v2836 = vshrl.u32 %v2835, 7
        %v2837 = vsub.s32 %v2834, %v2836
        %v2838 = vrot.slane %v2830, %v2837
        %v2840 = vunpack.c.l.s4 1966171168
        %v2841 = vunpack.c.0.s8 %v2840
        %v2842 = vlaneseq
        %v2843 = vshrl.u32 %v2842, 7
        %v2844 = vsub.s32 %v2841, %v2843
        %v2845 = vrot.slane %v2831, %v2844
        %v2846 = vcombine.low %v2838, %v2845
        %v2847 = vcombine.low %v1384, %v1388
        %v2848 = vcombine.low %v1392, %v1396
        %v2849 = vcombine.low %v1400, %v1404
        %v2850 = vcombine.low %v1408, %v1412
        %v2852 = vunpack.c.l.s4 1966171168
        %v2853 = vunpack.c.0.s8 %v2852
        %v2854 = vlaneseq
        %v2855 = vshrl.u32 %v2854, 7
        %v2856 = vsub.s32 %v2853, %v2855
        %v2857 = vrot.slane %v2847, %v2856
        %v2859 = vunpack.c.l.s4 1966171168
        %v2860 = vunpack.c.0.s8 %v2859
        %v2861 = vlaneseq
        %v2862 = vshrl.u32 %v2861, 7
        %v2863 = vsub.s32 %v2860, %v2862
        %v2864 = vrot.slane %v2848, %v2863
        %v2866 = vunpack.c.l.s4 1966171168
        %v2867 = vunpack.c.0.s8 %v2866
        %v2868 = vlaneseq
        %v2869 = vshrl.u32 %v2868, 7
        %v2870 = vsub.s32 %v2867, %v2869
        %v2871 = vrot.slane %v2849, %v2870
        %v2873 = vunpack.c.l.s4 1966171168
        %v2874 = vunpack.c.0.s8 %v2873
        %v2875 = vlaneseq
        %v2876 = vshrl.u32 %v2875, 7
        %v2877 = vsub.s32 %v2874, %v2876
        %v2878 = vrot.slane %v2850, %v2877
        %v2879 = vcombine.low %v2857, %v2864
        %v2880 = vcombine.low %v2871, %v2878
        %v2882 = vunpack.c.l.s4 1966171168
        %v2883 = vunpack.c.0.s8 %v2882
        %v2884 = vlaneseq
        %v2885 = vshrl.u32 %v2884, 7
        %v2886 = vsub.s32 %v2883, %v2885
        %v2887 = vrot.slane %v2879, %v2886
        %v2889 = vunpack.c.l.s4 1966171168
        %v2890 = vunpack.c.0.s8 %v2889
        %v2891 = vlaneseq
        %v2892 = vshrl.u32 %v2891, 7
        %v2893 = vsub.s32 %v2890, %v2892
        %v2894 = vrot.slane %v2880, %v2893
        %v2895 = vcombine.low %v2887, %v2894
        %v2896 = vcombine.low %v1416, %v1420
        %v2897 = vcombine.low %v1424, %v1428
        %v2898 = vcombine.low %v1432, %v1436
        %v2899 = vcombine.low %v1440, %v1444
        %v2901 = vunpack.c.l.s4 1966171168
        %v2902 = vunpack.c.0.s8 %v2901
        %v2903 = vlaneseq
        %v2904 = vshrl.u32 %v2903, 7
        %v2905 = vsub.s32 %v2902, %v2904
        %v2906 = vrot.slane %v2896, %v2905
        %v2908 = vunpack.c.l.s4 1966171168
        %v2909 = vunpack.c.0.s8 %v2908
        %v2910 = vlaneseq
        %v2911 = vshrl.u32 %v2910, 7
        %v2912 = vsub.s32 %v2909, %v2911
        %v2913 = vrot.slane %v2897, %v2912
        %v2915 = vunpack.c.l.s4 1966171168
        %v2916 = vunpack.c.0.s8 %v2915
        %v2917 = vlaneseq
        %v2918 = vshrl.u32 %v2917, 7
        %v2919 = vsub.s32 %v2916, %v2918
        %v2920 = vrot.slane %v2898, %v2919
        %v2922 = vunpack.c.l.s4 1966171168
        %v2923 = vunpack.c.0.s8 %v2922
        %v2924 = vlaneseq
        %v2925 = vshrl.u32 %v2924, 7
        %v2926 = vsub.s32 %v2923, %v2925
        %v2927 = vrot.slane %v2899, %v2926
        %v2928 = vcombine.low %v2906, %v2913
        %v2929 = vcombine.low %v2920, %v2927
        %v2931 = vunpack.c.l.s4 1966171168
        %v2932 = vunpack.c.0.s8 %v2931
        %v2933 = vlaneseq
        %v2934 = vshrl.u32 %v2933, 7
        %v2935 = vsub.s32 %v2932, %v2934
        %v2936 = vrot.slane %v2928, %v2935
        %v2938 = vunpack.c.l.s4 1966171168
        %v2939 = vunpack.c.0.s8 %v2938
        %v2940 = vlaneseq
        %v2941 = vshrl.u32 %v2940, 7
        %v2942 = vsub.s32 %v2939, %v2941
        %v2943 = vrot.slane %v2929, %v2942
        %v2944 = vcombine.low %v2936, %v2943
        %v2945 = vcombine.low %v1448, %v1452
        %v2946 = vcombine.low %v1456, %v1460
        %v2947 = vcombine.low %v1464, %v1468
        %v2948 = vcombine.low %v1472, %v1476
        %v2950 = vunpack.c.l.s4 1966171168
        %v2951 = vunpack.c.0.s8 %v2950
        %v2952 = vlaneseq
        %v2953 = vshrl.u32 %v2952, 7
        %v2954 = vsub.s32 %v2951, %v2953
        %v2955 = vrot.slane %v2945, %v2954
        %v2957 = vunpack.c.l.s4 1966171168
        %v2958 = vunpack.c.0.s8 %v2957
        %v2959 = vlaneseq
        %v2960 = vshrl.u32 %v2959, 7
        %v2961 = vsub.s32 %v2958, %v2960
        %v2962 = vrot.slane %v2946, %v2961
        %v2964 = vunpack.c.l.s4 1966171168
        %v2965 = vunpack.c.0.s8 %v2964
        %v2966 = vlaneseq
        %v2967 = vshrl.u32 %v2966, 7
        %v2968 = vsub.s32 %v2965, %v2967
        %v2969 = vrot.slane %v2947, %v2968
        %v2971 = vunpack.c.l.s4 1966171168
        %v2972 = vunpack.c.0.s8 %v2971
        %v2973 = vlaneseq
        %v2974 = vshrl.u32 %v2973, 7
        %v2975 = vsub.s32 %v2972, %v2974
        %v2976 = vrot.slane %v2948, %v2975
        %v2977 = vcombine.low %v2955, %v2962
        %v2978 = vcombine.low %v2969, %v2976
        %v2980 = vunpack.c.l.s4 1966171168
        %v2981 = vunpack.c.0.s8 %v2980
        %v2982 = vlaneseq
        %v2983 = vshrl.u32 %v2982, 7
        %v2984 = vsub.s32 %v2981, %v2983
        %v2985 = vrot.slane %v2977, %v2984
        %v2987 = vunpack.c.l.s4 1966171168
        %v2988 = vunpack.c.0.s8 %v2987
        %v2989 = vlaneseq
        %v2990 = vshrl.u32 %v2989, 7
        %v2991 = vsub.s32 %v2988, %v2990
        %v2992 = vrot.slane %v2978, %v2991
        %v2993 = vcombine.low %v2985, %v2992
        %v2994 = vcombine.low %v1480, %v1484
        %v2995 = vcombine.low %v1488, %v1492
        %v2996 = vcombine.low %v1496, %v1500
        %v2997 = vcombine.low %v1504, %v1508
        %v2999 = vunpack.c.l.s4 1966171168
        %v3000 = vunpack.c.0.s8 %v2999
        %v3001 = vlaneseq
        %v3002 = vshrl.u32 %v3001, 7
        %v3003 = vsub.s32 %v3000, %v3002
        %v3004 = vrot.slane %v2994, %v3003
        %v3006 = vunpack.c.l.s4 1966171168
        %v3007 = vunpack.c.0.s8 %v3006
        %v3008 = vlaneseq
        %v3009 = vshrl.u32 %v3008, 7
        %v3010 = vsub.s32 %v3007, %v3009
        %v3011 = vrot.slane %v2995, %v3010
        %v3013 = vunpack.c.l.s4 1966171168
        %v3014 = vunpack.c.0.s8 %v3013
        %v3015 = vlaneseq
        %v3016 = vshrl.u32 %v3015, 7
        %v3017 = vsub.s32 %v3014, %v3016
        %v3018 = vrot.slane %v2996, %v3017
        %v3020 = vunpack.c.l.s4 1966171168
        %v3021 = vunpack.c.0.s8 %v3020
        %v3022 = vlaneseq
        %v3023 = vshrl.u32 %v3022, 7
        %v3024 = vsub.s32 %v3021, %v3023
        %v3025 = vrot.slane %v2997, %v3024
        %v3026 = vcombine.low %v3004, %v3011
        %v3027 = vcombine.low %v3018, %v3025
        %v3029 = vunpack.c.l.s4 1966171168
        %v3030 = vunpack.c.0.s8 %v3029
        %v3031 = vlaneseq
        %v3032 = vshrl.u32 %v3031, 7
        %v3033 = vsub.s32 %v3030, %v3032
        %v3034 = vrot.slane %v3026, %v3033
        %v3036 = vunpack.c.l.s4 1966171168
        %v3037 = vunpack.c.0.s8 %v3036
        %v3038 = vlaneseq
        %v3039 = vshrl.u32 %v3038, 7
        %v3040 = vsub.s32 %v3037, %v3039
        %v3041 = vrot.slane %v3027, %v3040
        %v3042 = vcombine.low %v3034, %v3041
        %v3043 = vcombine.low %v1512, %v1516
        %v3044 = vcombine.low %v1520, %v1524
        %v3045 = vcombine.low %v1528, %v1532
        %v3046 = vcombine.low %v1536, %v1540
        %v3048 = vunpack.c.l.s4 1966171168
        %v3049 = vunpack.c.0.s8 %v3048
        %v3050 = vlaneseq
        %v3051 = vshrl.u32 %v3050, 7
        %v3052 = vsub.s32 %v3049, %v3051
        %v3053 = vrot.slane %v3043, %v3052
        %v3055 = vunpack.c.l.s4 1966171168
        %v3056 = vunpack.c.0.s8 %v3055
        %v3057 = vlaneseq
        %v3058 = vshrl.u32 %v3057, 7
        %v3059 = vsub.s32 %v3056, %v3058
        %v3060 = vrot.slane %v3044, %v3059
        %v3062 = vunpack.c.l.s4 1966171168
        %v3063 = vunpack.c.0.s8 %v3062
        %v3064 = vlaneseq
        %v3065 = vshrl.u32 %v3064, 7
        %v3066 = vsub.s32 %v3063, %v3065
        %v3067 = vrot.slane %v3045, %v3066
        %v3069 = vunpack.c.l.s4 1966171168
        %v3070 = vunpack.c.0.s8 %v3069
        %v3071 = vlaneseq
        %v3072 = vshrl.u32 %v3071, 7
        %v3073 = vsub.s32 %v3070, %v3072
        %v3074 = vrot.slane %v3046, %v3073
        %v3075 = vcombine.low %v3053, %v3060
        %v3076 = vcombine.low %v3067, %v3074
        %v3078 = vunpack.c.l.s4 1966171168
        %v3079 = vunpack.c.0.s8 %v3078
        %v3080 = vlaneseq
        %v3081 = vshrl.u32 %v3080, 7
        %v3082 = vsub.s32 %v3079, %v3081
        %v3083 = vrot.slane %v3075, %v3082
        %v3085 = vunpack.c.l.s4 1966171168
        %v3086 = vunpack.c.0.s8 %v3085
        %v3087 = vlaneseq
        %v3088 = vshrl.u32 %v3087, 7
        %v3089 = vsub.s32 %v3086, %v3088
        %v3090 = vrot.slane %v3076, %v3089
        %v3091 = vcombine.low %v3083, %v3090
        %v3092 = vcombine.low %v1544, %v1548
        %v3093 = vcombine.low %v1552, %v1556
        %v3094 = vcombine.low %v1560, %v1564
        %v3095 = vcombine.low %v1568, %v1572
        %v3097 = vunpack.c.l.s4 1966171168
        %v3098 = vunpack.c.0.s8 %v3097
        %v3099 = vlaneseq
        %v3100 = vshrl.u32 %v3099, 7
        %v3101 = vsub.s32 %v3098, %v3100
        %v3102 = vrot.slane %v3092, %v3101
        %v3104 = vunpack.c.l.s4 1966171168
        %v3105 = vunpack.c.0.s8 %v3104
        %v3106 = vlaneseq
        %v3107 = vshrl.u32 %v3106, 7
        %v3108 = vsub.s32 %v3105, %v3107
        %v3109 = vrot.slane %v3093, %v3108
        %v3111 = vunpack.c.l.s4 1966171168
        %v3112 = vunpack.c.0.s8 %v3111
        %v3113 = vlaneseq
        %v3114 = vshrl.u32 %v3113, 7
        %v3115 = vsub.s32 %v3112, %v3114
        %v3116 = vrot.slane %v3094, %v3115
        %v3118 = vunpack.c.l.s4 1966171168
        %v3119 = vunpack.c.0.s8 %v3118
        %v3120 = vlaneseq
        %v3121 = vshrl.u32 %v3120, 7
        %v3122 = vsub.s32 %v3119, %v3121
        %v3123 = vrot.slane %v3095, %v3122
        %v3124 = vcombine.low %v3102, %v3109
        %v3125 = vcombine.low %v3116, %v3123
        %v3127 = vunpack.c.l.s4 1966171168
        %v3128 = vunpack.c.0.s8 %v3127
        %v3129 = vlaneseq
        %v3130 = vshrl.u32 %v3129, 7
        %v3131 = vsub.s32 %v3128, %v3130
        %v3132 = vrot.slane %v3124, %v3131
        %v3134 = vunpack.c.l.s4 1966171168
        %v3135 = vunpack.c.0.s8 %v3134
        %v3136 = vlaneseq
        %v3137 = vshrl.u32 %v3136, 7
        %v3138 = vsub.s32 %v3135, %v3137
        %v3139 = vrot.slane %v3125, %v3138
        %v3140 = vcombine.low %v3132, %v3139
        %3141 = vset.pattern.permute.xlu0 0
        %3142 = vperm.xlu0 %3141, %v1621
        %v3143 = vpop.permute.xlu0 %3142
        %3144 = vset.pattern.permute.xlu0 0
        %3145 = vperm.xlu0 %3144, %v1670
        %v3146 = vpop.permute.xlu0 %3145
        %3147 = vset.pattern.permute.xlu0 0
        %3148 = vperm.xlu0 %3147, %v1719
        %v3149 = vpop.permute.xlu0 %3148
        %3150 = vset.pattern.permute.xlu0 0
        %3151 = vperm.xlu0 %3150, %v1768
        %v3152 = vpop.permute.xlu0 %3151
        %3153 = vset.pattern.permute.xlu0 0
        %3154 = vperm.xlu0 %3153, %v1817
        %v3155 = vpop.permute.xlu0 %3154
        %3156 = vset.pattern.permute.xlu0 0
        %3157 = vperm.xlu0 %3156, %v1866
        %v3158 = vpop.permute.xlu0 %3157
        %3159 = vset.pattern.permute.xlu0 0
        %3160 = vperm.xlu0 %3159, %v1915
        %v3161 = vpop.permute.xlu0 %3160
        %3162 = vset.pattern.permute.xlu0 0
        %3163 = vperm.xlu0 %3162, %v1964
        %v3164 = vpop.permute.xlu0 %3163
        %3165 = vset.pattern.permute.xlu0 0
        %3166 = vperm.xlu0 %3165, %v2013
        %v3167 = vpop.permute.xlu0 %3166
        %3168 = vset.pattern.permute.xlu0 0
        %3169 = vperm.xlu0 %3168, %v2062
        %v3170 = vpop.permute.xlu0 %3169
        %3171 = vset.pattern.permute.xlu0 0
        %3172 = vperm.xlu0 %3171, %v2111
        %v3173 = vpop.permute.xlu0 %3172
        %3174 = vset.pattern.permute.xlu0 0
        %3175 = vperm.xlu0 %3174, %v2160
        %v3176 = vpop.permute.xlu0 %3175
        %3177 = vset.pattern.permute.xlu0 0
        %3178 = vperm.xlu0 %3177, %v2209
        %v3179 = vpop.permute.xlu0 %3178
        %3180 = vset.pattern.permute.xlu0 0
        %3181 = vperm.xlu0 %3180, %v2258
        %v3182 = vpop.permute.xlu0 %3181
        %3183 = vset.pattern.permute.xlu0 0
        %3184 = vperm.xlu0 %3183, %v2307
        %v3185 = vpop.permute.xlu0 %3184
        %3186 = vset.pattern.permute.xlu0 0
        %3187 = vperm.xlu0 %3186, %v2356
        %v3188 = vpop.permute.xlu0 %3187
        %3189 = vset.pattern.permute.xlu0 0
        %3190 = vperm.xlu0 %3189, %v2405
        %v3191 = vpop.permute.xlu0 %3190
        %3192 = vset.pattern.permute.xlu0 0
        %3193 = vperm.xlu0 %3192, %v2454
        %v3194 = vpop.permute.xlu0 %3193
        %3195 = vset.pattern.permute.xlu0 0
        %3196 = vperm.xlu0 %3195, %v2503
        %v3197 = vpop.permute.xlu0 %3196
        %3198 = vset.pattern.permute.xlu0 0
        %3199 = vperm.xlu0 %3198, %v2552
        %v3200 = vpop.permute.xlu0 %3199
        %3201 = vset.pattern.permute.xlu0 0
        %3202 = vperm.xlu0 %3201, %v2601
        %v3203 = vpop.permute.xlu0 %3202
        %3204 = vset.pattern.permute.xlu0 0
        %3205 = vperm.xlu0 %3204, %v2650
        %v3206 = vpop.permute.xlu0 %3205
        %3207 = vset.pattern.permute.xlu0 0
        %3208 = vperm.xlu0 %3207, %v2699
        %v3209 = vpop.permute.xlu0 %3208
        %3210 = vset.pattern.permute.xlu0 0
        %3211 = vperm.xlu0 %3210, %v2748
        %v3212 = vpop.permute.xlu0 %3211
        %3213 = vset.pattern.permute.xlu0 0
        %3214 = vperm.xlu0 %3213, %v2797
        %v3215 = vpop.permute.xlu0 %3214
        %3216 = vset.pattern.permute.xlu0 0
        %3217 = vperm.xlu0 %3216, %v2846
        %v3218 = vpop.permute.xlu0 %3217
        %3219 = vset.pattern.permute.xlu0 0
        %3220 = vperm.xlu0 %3219, %v2895
        %v3221 = vpop.permute.xlu0 %3220
        %3222 = vset.pattern.permute.xlu0 0
        %3223 = vperm.xlu0 %3222, %v2944
        %v3224 = vpop.permute.xlu0 %3223
        %3225 = vset.pattern.permute.xlu0 0
        %3226 = vperm.xlu0 %3225, %v2993
        %v3227 = vpop.permute.xlu0 %3226
        %3228 = vset.pattern.permute.xlu0 0
        %3229 = vperm.xlu0 %3228, %v3042
        %v3230 = vpop.permute.xlu0 %3229
        %3231 = vset.pattern.permute.xlu0 0
        %3232 = vperm.xlu0 %3231, %v3091
        %v3233 = vpop.permute.xlu0 %3232
        %3234 = vset.pattern.permute.xlu0 0
        %3235 = vperm.xlu0 %3234, %v3140
        %v3236 = vpop.permute.xlu0 %3235
        %v3237 = vlaneseq
        %v3238 = vand.u32 %v3237, 127
        %v3239 = vlaneseq
        %v3240 = vshrl.u32 %v3239, 7
        %v3241 = vsub.s32 %v3238, %v3240
        %v3242 = vrot.slane %v3143, %v3241
        %v3243 = vadd.s32 %v3238, 4294967288
        %v3244 = vlaneseq
        %v3245 = vshrl.u32 %v3244, 7
        %v3246 = vsub.s32 %v3243, %v3245
        %v3247 = vrot.slane %v3146, %v3246
        %vm3248 = vcmask 130112
        %v3249 = vsel %vm3248, %v3247, %v3242
        %v3250 = vadd.s32 %v3238, 4294967280
        %v3251 = vlaneseq
        %v3252 = vshrl.u32 %v3251, 7
        %v3253 = vsub.s32 %v3250, %v3252
        %v3254 = vrot.slane %v3149, %v3253
        %vm3255 = vcmask 195712
        %v3256 = vsel %vm3255, %v3254, %v3249
        %v3257 = vadd.s32 %v3238, 4294967272
        %v3258 = vlaneseq
        %v3259 = vshrl.u32 %v3258, 7
        %v3260 = vsub.s32 %v3257, %v3259
        %v3261 = vrot.slane %v3152, %v3260
        %vm3262 = vcmask 261312
        %v3263 = vsel %vm3262, %v3261, %v3256
        %v3264 = vadd.s32 %v3238, 4294967264
        %v3265 = vlaneseq
        %v3266 = vshrl.u32 %v3265, 7
        %v3267 = vsub.s32 %v3264, %v3266
        %v3268 = vrot.slane %v3155, %v3267
        %vm3269 = vcmask 326912
        %v3270 = vsel %vm3269, %v3268, %v3263
        %v3271 = vadd.s32 %v3238, 4294967256
        %v3272 = vlaneseq
        %v3273 = vshrl.u32 %v3272, 7
        %v3274 = vsub.s32 %v3271, %v3273
        %v3275 = vrot.slane %v3158, %v3274
        %vm3276 = vcmask 392512
        %v3277 = vsel %vm3276, %v3275, %v3270
        %v3278 = vadd.s32 %v3238, 4294967248
        %v3279 = vlaneseq
        %v3280 = vshrl.u32 %v3279, 7
        %v3281 = vsub.s32 %v3278, %v3280
        %v3282 = vrot.slane %v3161, %v3281
        %vm3283 = vcmask 458112
        %v3284 = vsel %vm3283, %v3282, %v3277
        %v3285 = vadd.s32 %v3238, 4294967240
        %v3286 = vlaneseq
        %v3287 = vshrl.u32 %v3286, 7
        %v3288 = vsub.s32 %v3285, %v3287
        %v3289 = vrot.slane %v3164, %v3288
        %vm3290 = vcmask 523712
        %v3291 = vsel %vm3290, %v3289, %v3284
        %v3292 = vadd.s32 %v3238, 4294967232
        %v3293 = vlaneseq
        %v3294 = vshrl.u32 %v3293, 7
        %v3295 = vsub.s32 %v3292, %v3294
        %v3296 = vrot.slane %v3167, %v3295
        %vm3297 = vcmask 589312
        %v3298 = vsel %vm3297, %v3296, %v3291
        %v3299 = vadd.s32 %v3238, 4294967224
        %v3300 = vlaneseq
        %v3301 = vshrl.u32 %v3300, 7
        %v3302 = vsub.s32 %v3299, %v3301
        %v3303 = vrot.slane %v3170, %v3302
        %vm3304 = vcmask 654912
        %v3305 = vsel %vm3304, %v3303, %v3298
        %v3306 = vadd.s32 %v3238, 4294967216
        %v3307 = vlaneseq
        %v3308 = vshrl.u32 %v3307, 7
        %v3309 = vsub.s32 %v3306, %v3308
        %v3310 = vrot.slane %v3173, %v3309
        %vm3311 = vcmask 720512
        %v3312 = vsel %vm3311, %v3310, %v3305
        %v3313 = vadd.s32 %v3238, 4294967208
        %v3314 = vlaneseq
        %v3315 = vshrl.u32 %v3314, 7
        %v3316 = vsub.s32 %v3313, %v3315
        %v3317 = vrot.slane %v3176, %v3316
        %vm3318 = vcmask 786112
        %v3319 = vsel %vm3318, %v3317, %v3312
        %v3320 = vadd.s32 %v3238, 4294967200
        %v3321 = vlaneseq
        %v3322 = vshrl.u32 %v3321, 7
        %v3323 = vsub.s32 %v3320, %v3322
        %v3324 = vrot.slane %v3179, %v3323
        %vm3325 = vcmask 851712
        %v3326 = vsel %vm3325, %v3324, %v3319
        %v3327 = vadd.s32 %v3238, 4294967192
        %v3328 = vlaneseq
        %v3329 = vshrl.u32 %v3328, 7
        %v3330 = vsub.s32 %v3327, %v3329
        %v3331 = vrot.slane %v3182, %v3330
        %vm3332 = vcmask 917312
        %v3333 = vsel %vm3332, %v3331, %v3326
        %v3334 = vadd.s32 %v3238, 4294967184
        %v3335 = vlaneseq
        %v3336 = vshrl.u32 %v3335, 7
        %v3337 = vsub.s32 %v3334, %v3336
        %v3338 = vrot.slane %v3185, %v3337
        %vm3339 = vcmask 982912
        %v3340 = vsel %vm3339, %v3338, %v3333
        %v3341 = vadd.s32 %v3238, 4294967176
        %v3342 = vlaneseq
        %v3343 = vshrl.u32 %v3342, 7
        %v3344 = vsub.s32 %v3341, %v3343
        %v3345 = vrot.slane %v3188, %v3344
        %vm3346 = vcmask 1048512
        %v3347 = vsel %vm3346, %v3345, %v3340
        %v3348 = vlaneseq
        %v3349 = vshrl.u32 %v3348, 7
        %v3350 = vsub.s32 %v3238, %v3349
        %v3351 = vrot.slane %v3191, %v3350
        %v3352 = vlaneseq
        %v3353 = vshrl.u32 %v3352, 7
        %v3354 = vsub.s32 %v3243, %v3353
        %v3355 = vrot.slane %v3194, %v3354
        %v3356 = vsel %vm3248, %v3355, %v3351
        %v3357 = vlaneseq
        %v3358 = vshrl.u32 %v3357, 7
        %v3359 = vsub.s32 %v3250, %v3358
        %v3360 = vrot.slane %v3197, %v3359
        %v3361 = vsel %vm3255, %v3360, %v3356
        %v3362 = vlaneseq
        %v3363 = vshrl.u32 %v3362, 7
        %v3364 = vsub.s32 %v3257, %v3363
        %v3365 = vrot.slane %v3200, %v3364
        %v3366 = vsel %vm3262, %v3365, %v3361
        %v3367 = vlaneseq
        %v3368 = vshrl.u32 %v3367, 7
        %v3369 = vsub.s32 %v3264, %v3368
        %v3370 = vrot.slane %v3203, %v3369
        %v3371 = vsel %vm3269, %v3370, %v3366
        %v3372 = vlaneseq
        %v3373 = vshrl.u32 %v3372, 7
        %v3374 = vsub.s32 %v3271, %v3373
        %v3375 = vrot.slane %v3206, %v3374
        %v3376 = vsel %vm3276, %v3375, %v3371
        %v3377 = vlaneseq
        %v3378 = vshrl.u32 %v3377, 7
        %v3379 = vsub.s32 %v3278, %v3378
        %v3380 = vrot.slane %v3209, %v3379
        %v3381 = vsel %vm3283, %v3380, %v3376
        %v3382 = vlaneseq
        %v3383 = vshrl.u32 %v3382, 7
        %v3384 = vsub.s32 %v3285, %v3383
        %v3385 = vrot.slane %v3212, %v3384
        %v3386 = vsel %vm3290, %v3385, %v3381
        %v3387 = vlaneseq
        %v3388 = vshrl.u32 %v3387, 7
        %v3389 = vsub.s32 %v3292, %v3388
        %v3390 = vrot.slane %v3215, %v3389
        %v3391 = vsel %vm3297, %v3390, %v3386
        %v3392 = vlaneseq
        %v3393 = vshrl.u32 %v3392, 7
        %v3394 = vsub.s32 %v3299, %v3393
        %v3395 = vrot.slane %v3218, %v3394
        %v3396 = vsel %vm3304, %v3395, %v3391
        %v3397 = vlaneseq
        %v3398 = vshrl.u32 %v3397, 7
        %v3399 = vsub.s32 %v3306, %v3398
        %v3400 = vrot.slane %v3221, %v3399
        %v3401 = vsel %vm3311, %v3400, %v3396
        %v3402 = vlaneseq
        %v3403 = vshrl.u32 %v3402, 7
        %v3404 = vsub.s32 %v3313, %v3403
        %v3405 = vrot.slane %v3224, %v3404
        %v3406 = vsel %vm3318, %v3405, %v3401
        %v3407 = vlaneseq
        %v3408 = vshrl.u32 %v3407, 7
        %v3409 = vsub.s32 %v3320, %v3408
        %v3410 = vrot.slane %v3227, %v3409
        %v3411 = vsel %vm3325, %v3410, %v3406
        %v3412 = vlaneseq
        %v3413 = vshrl.u32 %v3412, 7
        %v3414 = vsub.s32 %v3327, %v3413
        %v3415 = vrot.slane %v3230, %v3414
        %v3416 = vsel %vm3332, %v3415, %v3411
        %v3417 = vlaneseq
        %v3418 = vshrl.u32 %v3417, 7
        %v3419 = vsub.s32 %v3334, %v3418
        %v3420 = vrot.slane %v3233, %v3419
        %v3421 = vsel %vm3339, %v3420, %v3416
        %v3422 = vlaneseq
        %v3423 = vshrl.u32 %v3422, 7
        %v3424 = vsub.s32 %v3341, %v3423
        %v3425 = vrot.slane %v3236, %v3424
        %v3426 = vsel %vm3346, %v3425, %v3421
        %v3427 = vcombine.low %v3347, %v3426
        %v3429 = vunpack.c.l.s4 1966171168
        %v3430 = vunpack.c.0.s8 %v3429
        %v3431 = vlaneseq
        %v3432 = vshrl.u32 %v3431, 7
        %v3433 = vsub.s32 %v3430, %v3432
        %v3434 = vrot.slane %v3427, %v3433
        %v3436 = vunpack.c.l.s4 1966171168
        %v3437 = vunpack.c.0.s8 %v3436
        %v3438 = vlaneseq
        %v3439 = vshrl.u32 %v3438, 7
        %v3440 = vsub.s32 %v3437, %v3439
        %v3441 = vrot.slane %v3434, %v3440
        %v3443 = vadd.f32 %v516, %v3441
        %v3444 = vlaneseq
        %vm3445 = vcmp.ge.s32.totalorder %v3444, 0
        %vm3446 = vcmp.lt.s32.totalorder %v3444, 256
        %vm3447 = vmand %vm3445, %vm3446
        %3448 = vst.msk [vmem:[%s191] sm:$0x3] %vm3447, %v3443
        %s3449 = sand.u32 %s113, 1
        %s3450 = scalar_lea.sflag [#allocation10], %s3449
        %s3451 = sand.u32 %s113, 1
        %s3452 = smul.addr %s3451, 2
        %s3453 = scalar_lea.vmem [#allocation9], %s3452
        // Predicated region
        $region107: #{tpu_custom_call.1} parent=31 // pred_check
          %p3454 = pneg %p123
        $region108: #{tpu_custom_call.1} parent=31 // pred_check_branch
          %3456 = sbr.rel (%p3454) target = $region110
        $region109: #{tpu_custom_call.1} parent=31 // pred_region
          %s3457 = smul.u32 2, %s32
          %s3459 = ssub.s32 32, 32
          %3460 = vsyncadd %s3450, %s3459
          %s3461 = smul.addr %s3457, 16
          %s3462 = scalar_lea.hbm %s7, %s3461
          %s3464 = sshll.u32 %s3453, 4
          %s3465 = int_to_ptr.vmem [resolvable:$true] %s3464
          %3467 = dma.vmem_to_hbm [thread:$0]  %s3465, 32, %s3462, %s3450
        $region110: #{tpu_custom_call.1} parent=31 // pred_fallthru
          _
      $region32: #{tpu_custom_call.1} parent=5 // pred_fallthru
        _
      %p3468 = scmp.le.s32.totalorder 2, %s27
      // Predicated region
      $region111: #{tpu_custom_call.1} parent=5 // pred_check
        %p3469 = pneg %p3468
      $region112: #{tpu_custom_call.1} parent=5 // pred_check_branch
        %3471 = sbr.rel (%p3469) target = $region114
      $region113: #{tpu_custom_call.1} parent=5 // pred_region
        %s3472 = ssub.s32 %s27, 2
        // Predicated region
        $region115: #{tpu_custom_call.1} parent=113 // pred_check
          %p3473 = pneg %p129
        $region116: #{tpu_custom_call.1} parent=113 // pred_check_branch
          %3475 = sbr.rel (%p3473) target = $region118
        $region117: #{tpu_custom_call.1} parent=113 // pred_region
          %s3476 = sand.u32 %s114, 1
          %s3477 = scalar_lea.sflag [#allocation10], %s3476
          %s3478 = sand.u32 %s114, 1
          %s3479 = smul.addr %s3478, 2
          %s3480 = scalar_lea.vmem [#allocation9], %s3479
          %3481 = dma.done %s3477, 32
        $region118: #{tpu_custom_call.1} parent=113 // pred_fallthru
          _
      $region114: #{tpu_custom_call.1} parent=5 // pred_fallthru
        _
    $region6: #{tpu_custom_call.1} parent=1 // loop_footer
      %s31 = sadd.s32 1, %s27
    $region7: #{tpu_custom_call.1} parent=1 // loop_footer_branch
      %26 = sbr.rel target = $region3
    $region8: #{tpu_custom_call.1} parent=1 // loop_exit
      _
    %3482 = vsyncpa [#allocation10], 1
    %s3483 = scalar_lea.sflag [#allocation10], 1
    %3484 = vsyncpa %s3483, 1
  %3485 = vsyncmov [#allocation4]
  %s3486 = vpop.sfrf %3485
  %p3487 = scmp.eq.s32.totalorder %s3486, 0
  %p3488 = pneg %p3487
  %3490 = shalt.err (%p3488)
  %s3491 = scalar_lea.sflag [#allocation4], 1
  %3492 = vsyncmov %s3491
  %s3493 = vpop.sfrf %3492
  %p3494 = scmp.eq.s32.totalorder %s3493, 0
  %p3495 = pneg %p3494
  %3497 = shalt.err (%p3495)

</llo_original>
